<compile_context>
chip_gen: v5e
topology: v5e:2x2
jax: 0.10.0
libtpu: 0.0.40
codegen_flags: <defaults>
</compile_context>

<pallas_src>
import functools

import jax
import jax.numpy as jnp
from jax import lax
from jax.experimental import pallas as pl
from jax.experimental.pallas import tpu as pltpu


def _lwan_kernel(T, H, L, BB,
                 emb_ref,              # [T, BB, E]  time-major batch tile
                 wx_ref, bx_ref,       # fused input projection [E, 2H], [1, 2H]
                 whf_ref, whb_ref,     # recurrent weights [H, H] each
                 u_ref,                # label attention [2H, L]
                 wdec3_ref, bdec_ref,  # decoder [L, 2H, L], [1, L]
                 out_ref,              # [BB, L]
                 xp_ref,               # scratch [T, BB, 2H]
                 hf_ref, hb_ref):      # scratch [T, BB, H] fwd / bwd hidden
    f32 = jnp.float32
    E = emb_ref.shape[2]

    # ---- fused input projection for both directions: one [T*BB,E]x[E,2H] ----
    emb2 = emb_ref[...].reshape(T * BB, E).astype(f32)
    xp = jnp.dot(emb2, wx_ref[...], preferred_element_type=f32) + bx_ref[...]
    xp_ref[...] = xp.reshape(T, BB, 2 * H)

    whf = whf_ref[...]
    whb = whb_ref[...]
    h0 = jnp.zeros((BB, H), f32)

    # ---- forward-direction RNN:  h_t = tanh(x_t Wx + h_{t-1} Wh + b) ----
    def fwd_body(t, h):
        h = jnp.tanh(xp_ref[t][:, :H] +
                     jnp.dot(h, whf, preferred_element_type=f32))
        hf_ref[t] = h
        return h
    lax.fori_loop(0, T, fwd_body, h0, unroll=T <= 16)

    # ---- backward-direction RNN ----
    def bwd_body(i, h):
        t = T - 1 - i
        h = jnp.tanh(xp_ref[t][:, H:] +
                     jnp.dot(h, whb, preferred_element_type=f32))
        hb_ref[t] = h
        return h
    lax.fori_loop(0, T, bwd_body, h0, unroll=T <= 16)

    hf = hf_ref[...]                                   # [T, BB, H]
    hb = hb_ref[...]                                   # [T, BB, H]

    # ---- label-wise attention scores + softmax over time ----
    uf = u_ref[:H, :]
    ub = u_ref[H:, :]
    scores2 = (jnp.dot(hf.reshape(T * BB, H), uf, preferred_element_type=f32) +
               jnp.dot(hb.reshape(T * BB, H), ub, preferred_element_type=f32))
    scores = scores2.reshape(T, BB, L)
    scores = scores - jnp.max(scores, axis=0, keepdims=True)
    p = jnp.exp(scores)
    attn = p * pl.reciprocal(jnp.sum(p, axis=0, keepdims=True), approx=True)

    # ---- label-wise context: contract the leading time axis (no attn.T),
    #      collected label-major so the decoder can batch over labels ----
    ctx_per_b = []
    for b in range(BB):                                # BB small & static
        attn_b = attn[:, b, :]                         # [T, L]
        hcat_b = jnp.concatenate([hf[:, b, :], hb[:, b, :]], axis=1)  # [T, 2H]
        ctx_b = lax.dot_general(attn_b, hcat_b,
                                (((0,), (0,)), ((), ())),
                                preferred_element_type=f32)           # [L, 2H]
        ctx_per_b.append(ctx_b)
    ctx_l = jnp.stack(ctx_per_b, axis=1)               # [L, BB, 2H]

    # ---- decoder: LinearMLC(2H*L -> L) as one label-batched contraction ----
    part = lax.dot_general(ctx_l, wdec3_ref[...],
                           (((2,), (1,)), ((0,), (0,))),
                           preferred_element_type=f32)  # [L, BB, L]
    out_ref[...] = jnp.sum(part, axis=0) + bdec_ref[...]


def lwan_forward(doc, params, block_b=8):
    B, T = doc.shape
    E = params['emb_table'].shape[1]
    H = params['whf'].shape[0]
    L = params['bdec'].shape[1]
    BB = block_b
    assert BB % 8 == 0, "batch tile must be a multiple of 8 (sublane width)"
    n_tiles = -(-B // BB)
    Bpad = n_tiles * BB

    # Glue: embedding gather, batch pad, time-major transpose.
    emb = params['emb_table'][doc].astype(jnp.float32)        # [B, T, E]
    if Bpad != B:
        emb = jnp.pad(emb, ((0, Bpad - B), (0, 0), (0, 0)))
    emb_tm = jnp.transpose(emb, (1, 0, 2))                    # [T, Bpad, E]

    # Fused / reshaped weights (done once, outside the kernel).
    wx = jnp.concatenate([params['wxf'], params['wxb']], axis=1)   # [E, 2H]
    bx = jnp.concatenate([params['bf'], params['bb']], axis=1)     # [1, 2H]
    wdec3 = params['wdec'].reshape(L, 2 * H, L)                    # [L, 2H, L]

    kernel = functools.partial(_lwan_kernel, T, H, L, BB)

    def whole(shape):
        n = len(shape)
        def imap(i):
            return (0,) * n
        return pl.BlockSpec(shape, imap)

    out = pl.pallas_call(
        kernel,
        out_shape=jax.ShapeDtypeStruct((Bpad, L), jnp.float32),
        grid=(n_tiles,),
        in_specs=[
            pl.BlockSpec((T, BB, E), lambda i: (0, i, 0)),   # batch-tile of emb
            whole((E, 2 * H)), whole((1, 2 * H)),            # fused input proj
            whole((H, H)), whole((H, H)),                    # recurrent weights
            whole((2 * H, L)),                               # label attention
            whole((L, 2 * H, L)), whole((1, L)),             # decoder
        ],
        out_specs=pl.BlockSpec((BB, L), lambda i: (i, 0)),
        scratch_shapes=[
            pltpu.VMEM((T, BB, 2 * H), jnp.float32),         # input projections
            pltpu.VMEM((T, BB, H), jnp.float32),             # fwd hidden states
            pltpu.VMEM((T, BB, H), jnp.float32),             # bwd hidden states
        ],
        compiler_params=pltpu.CompilerParams(
            dimension_semantics=("parallel",),
            vmem_limit_bytes=32 * 1024 * 1024,
        ),
    )(emb_tm, wx, bx,
      params['whf'], params['whb'],
      params['u'], wdec3, params['bdec'])
    return out[:B]


def lwan_ref(doc, params):
    """Pure-JAX reference (same math, no Pallas)."""
    emb = params['emb_table'][doc]
    B, T, _ = emb.shape
    H = params['whf'].shape[0]
    outs = []
    for b in range(B):
        e = emb[b]
        xpf = e @ params['wxf'] + params['bf']
        h = jnp.zeros((1, H), jnp.float32)
        fwd = []
        for t in range(T):
            h = jnp.tanh(xpf[t:t + 1] + h @ params['whf'])
            fwd.append(h)
        hf = jnp.concatenate(fwd, 0)
        xpb = e @ params['wxb'] + params['bb']
        h = jnp.zeros((1, H), jnp.float32)
        bwd = [None] * T
        for t in range(T - 1, -1, -1):
            h = jnp.tanh(xpb[t:t + 1] + h @ params['whb'])
            bwd[t] = h
        hb = jnp.concatenate(bwd, 0)
        hcat = jnp.concatenate([hf, hb], 1)
        attn = jax.nn.softmax(hcat @ params['u'], axis=0)
        ctx = attn.T @ hcat
        outs.append(ctx.reshape(1, -1) @ params['wdec'] + params['bdec'])
    return jnp.concatenate(outs, 0)


if __name__ == "__main__":
    # Small shapes consistent with the module's forward.
    B, T, E, H, L, V = 2, 8, 32, 16, 8, 50   # batch, seq, embed, hidden, labels, vocab

    key = jax.random.PRNGKey(0)
    ks = jax.random.split(key, 11)
    params = {
        'emb_table': 0.1 * jax.random.normal(ks[0], (V, E), jnp.float32),
        'wxf': 0.1 * jax.random.normal(ks[1], (E, H), jnp.float32),
        'whf': 0.1 * jax.random.normal(ks[2], (H, H), jnp.float32),
        'bf':  0.1 * jax.random.normal(ks[3], (1, H), jnp.float32),
        'wxb': 0.1 * jax.random.normal(ks[4], (E, H), jnp.float32),
        'whb': 0.1 * jax.random.normal(ks[5], (H, H), jnp.float32),
        'bb':  0.1 * jax.random.normal(ks[6], (1, H), jnp.float32),
        'u':   0.1 * jax.random.normal(ks[7], (2 * H, L), jnp.float32),
        'wdec': 0.1 * jax.random.normal(ks[8], (2 * H * L, L), jnp.float32),
        'bdec': 0.1 * jax.random.normal(ks[9], (1, L), jnp.float32),
    }
    doc = jax.random.randint(ks[10], (B, T), 0, V, dtype=jnp.int32)

    out = jax.block_until_ready(lwan_forward(doc, params))
    ref = lwan_ref(doc, params)
    assert out.shape == (B, L)
    # tolerance accounts for the EUP approximate reciprocal in the softmax
    assert jnp.allclose(out, ref, atol=2e-3, rtol=2e-3)
    print("KERNEL_OK")
</pallas_src>

<mosaic_0001>
module attributes {stable_mosaic.version = 11 : i64} {
  func.func @_lwan_kernel(%arg0: i32, %arg1: memref<8x8x32xf32, #tpu.memory_space<vmem>>, %arg2: memref<32x32xf32, #tpu.memory_space<vmem>>, %arg3: memref<1x32xf32, #tpu.memory_space<vmem>>, %arg4: memref<16x16xf32, #tpu.memory_space<vmem>>, %arg5: memref<16x16xf32, #tpu.memory_space<vmem>>, %arg6: memref<32x8xf32, #tpu.memory_space<vmem>>, %arg7: memref<8x32x8xf32, #tpu.memory_space<vmem>>, %arg8: memref<1x8xf32, #tpu.memory_space<vmem>>, %arg9: memref<8x8xf32, #tpu.memory_space<vmem>>, %arg10: memref<8x8x32xf32, #tpu.memory_space<vmem>>, %arg11: memref<8x8x16xf32, #tpu.memory_space<vmem>>, %arg12: memref<8x8x16xf32, #tpu.memory_space<vmem>>) attributes {dimension_semantics = [#tpu.dimension_semantics<parallel>], iteration_bounds = array<i64: 1>, scalar_prefetch = 0 : i64, scratch_operands = 3 : i64, tpu.core_type = #tpu.core_type<tc>, window_params = [{transform_indices = @transform_0, window_bounds = array<i64: 8, 8, 32>}, {pipeline_mode = #tpu.pipeline_mode<synchronous>, transform_indices = @transform_1, window_bounds = array<i64: 32, 32>}, {pipeline_mode = #tpu.pipeline_mode<synchronous>, transform_indices = @transform_2, window_bounds = array<i64: 1, 32>}, {pipeline_mode = #tpu.pipeline_mode<synchronous>, transform_indices = @transform_3, window_bounds = array<i64: 16, 16>}, {pipeline_mode = #tpu.pipeline_mode<synchronous>, transform_indices = @transform_4, window_bounds = array<i64: 16, 16>}, {pipeline_mode = #tpu.pipeline_mode<synchronous>, transform_indices = @transform_5, window_bounds = array<i64: 32, 8>}, {pipeline_mode = #tpu.pipeline_mode<synchronous>, transform_indices = @transform_6, window_bounds = array<i64: 8, 32, 8>}, {pipeline_mode = #tpu.pipeline_mode<synchronous>, transform_indices = @transform_7, window_bounds = array<i64: 1, 8>}, {transform_indices = @transform_8, window_bounds = array<i64: 8, 8>}]} {
    %c0 = arith.constant 0 : index
    %c0_0 = arith.constant 0 : index
    %c0_1 = arith.constant 0 : index
    %0 = vector.load %arg1[%c0, %c0_0, %c0_1] : memref<8x8x32xf32, #tpu.memory_space<vmem>>, vector<8x8x32xf32>
    %1 = vector.shape_cast %0 : vector<8x8x32xf32> to vector<64x32xf32>
    %c0_2 = arith.constant 0 : index
    %c0_3 = arith.constant 0 : index
    %2 = vector.load %arg2[%c0_2, %c0_3] : memref<32x32xf32, #tpu.memory_space<vmem>>, vector<32x32xf32>
    %cst = arith.constant dense<0.000000e+00> : vector<64x32xf32>
    %3 = tpu.matmul %1, %2, %cst {dimension_numbers = #tpu.dot_dimension_numbers<[1], [0], [0], [1], [0, 0, 1, 1], [], []>} : vector<64x32xf32>, vector<32x32xf32>, vector<64x32xf32> -> vector<64x32xf32>
    %c0_4 = arith.constant 0 : index
    %c0_5 = arith.constant 0 : index
    %4 = vector.load %arg3[%c0_4, %c0_5] : memref<1x32xf32, #tpu.memory_space<vmem>>, vector<1x32xf32>
    %5 = vector.broadcast %4 : vector<1x32xf32> to vector<64x32xf32>
    %6 = arith.addf %3, %5 : vector<64x32xf32>
    %7 = vector.shape_cast %6 : vector<64x32xf32> to vector<8x8x32xf32>
    %c0_6 = arith.constant 0 : index
    %c0_7 = arith.constant 0 : index
    %c0_8 = arith.constant 0 : index
    %8 = vector.load %arg10[%c0_6, %c0_7, %c0_8] : memref<8x8x32xf32, #tpu.memory_space<vmem>>, vector<8x8x32xf32>
    tpu.vector_store %arg10[%c0_6, %c0_7, %c0_8], %7 {strides = array<i32>} : memref<8x8x32xf32, #tpu.memory_space<vmem>>, vector<8x8x32xf32>,
    %c0_9 = arith.constant 0 : index
    %c0_10 = arith.constant 0 : index
    %9 = vector.load %arg4[%c0_9, %c0_10] : memref<16x16xf32, #tpu.memory_space<vmem>>, vector<16x16xf32>
    %c0_11 = arith.constant 0 : index
    %c0_12 = arith.constant 0 : index
    %10 = vector.load %arg5[%c0_11, %c0_12] : memref<16x16xf32, #tpu.memory_space<vmem>>, vector<16x16xf32>
    %cst_13 = arith.constant 0.000000e+00 : f32
    %11 = vector.broadcast %cst_13 : f32 to vector<8x16xf32>
    %c0_i32 = arith.constant 0 : i32
    %12 = arith.index_cast %c0_i32 : i32 to index
    %c0_14 = arith.constant 0 : index
    %c0_15 = arith.constant 0 : index
    %13 = vector.load %arg10[%12, %c0_14, %c0_15] : memref<8x8x32xf32, #tpu.memory_space<vmem>>, vector<1x8x32xf32>
    %14 = vector.shape_cast %13 : vector<1x8x32xf32> to vector<8x32xf32>
    %15 = vector.extract_strided_slice %14 {offsets = [0, 0], sizes = [8, 16], strides = [1, 1]} : vector<8x32xf32> to vector<8x16xf32>
    %cst_16 = arith.constant dense<0.000000e+00> : vector<8x16xf32>
    %16 = tpu.matmul %11, %9, %cst_16 {dimension_numbers = #tpu.dot_dimension_numbers<[1], [0], [0], [1], [0, 0, 1, 1], [], []>} : vector<8x16xf32>, vector<16x16xf32>, vector<8x16xf32> -> vector<8x16xf32>
    %17 = arith.addf %15, %16 : vector<8x16xf32>
    %18 = math.tanh %17 : vector<8x16xf32>
    %19 = arith.index_cast %c0_i32 : i32 to index
    %c0_17 = arith.constant 0 : index
    %c0_18 = arith.constant 0 : index
    %20 = vector.load %arg11[%19, %c0_17, %c0_18] : memref<8x8x16xf32, #tpu.memory_space<vmem>>, vector<1x8x16xf32>
    %21 = vector.shape_cast %20 : vector<1x8x16xf32> to vector<8x16xf32>
    %22 = vector.shape_cast %18 : vector<8x16xf32> to vector<1x8x16xf32>
    tpu.vector_store %arg11[%19, %c0_17, %c0_18], %22 {strides = array<i32>} : memref<8x8x16xf32, #tpu.memory_space<vmem>>, vector<1x8x16xf32>,
    %c1_i32 = arith.constant 1 : i32
    %23 = arith.index_cast %c1_i32 : i32 to index
    %c0_19 = arith.constant 0 : index
    %c0_20 = arith.constant 0 : index
    %24 = vector.load %arg10[%23, %c0_19, %c0_20] : memref<8x8x32xf32, #tpu.memory_space<vmem>>, vector<1x8x32xf32>
    %25 = vector.shape_cast %24 : vector<1x8x32xf32> to vector<8x32xf32>
    %26 = vector.extract_strided_slice %25 {offsets = [0, 0], sizes = [8, 16], strides = [1, 1]} : vector<8x32xf32> to vector<8x16xf32>
    %cst_21 = arith.constant dense<0.000000e+00> : vector<8x16xf32>
    %27 = tpu.matmul %18, %9, %cst_21 {dimension_numbers = #tpu.dot_dimension_numbers<[1], [0], [0], [1], [0, 0, 1, 1], [], []>} : vector<8x16xf32>, vector<16x16xf32>, vector<8x16xf32> -> vector<8x16xf32>
    %28 = arith.addf %26, %27 : vector<8x16xf32>
    %29 = math.tanh %28 : vector<8x16xf32>
    %30 = arith.index_cast %c1_i32 : i32 to index
    %c0_22 = arith.constant 0 : index
    %c0_23 = arith.constant 0 : index
    %31 = vector.load %arg11[%30, %c0_22, %c0_23] : memref<8x8x16xf32, #tpu.memory_space<vmem>>, vector<1x8x16xf32>
    %32 = vector.shape_cast %31 : vector<1x8x16xf32> to vector<8x16xf32>
    %33 = vector.shape_cast %29 : vector<8x16xf32> to vector<1x8x16xf32>
    tpu.vector_store %arg11[%30, %c0_22, %c0_23], %33 {strides = array<i32>} : memref<8x8x16xf32, #tpu.memory_space<vmem>>, vector<1x8x16xf32>,
    %c2_i32 = arith.constant 2 : i32
    %34 = arith.index_cast %c2_i32 : i32 to index
    %c0_24 = arith.constant 0 : index
    %c0_25 = arith.constant 0 : index
    %35 = vector.load %arg10[%34, %c0_24, %c0_25] : memref<8x8x32xf32, #tpu.memory_space<vmem>>, vector<1x8x32xf32>
    %36 = vector.shape_cast %35 : vector<1x8x32xf32> to vector<8x32xf32>
    %37 = vector.extract_strided_slice %36 {offsets = [0, 0], sizes = [8, 16], strides = [1, 1]} : vector<8x32xf32> to vector<8x16xf32>
    %cst_26 = arith.constant dense<0.000000e+00> : vector<8x16xf32>
    %38 = tpu.matmul %29, %9, %cst_26 {dimension_numbers = #tpu.dot_dimension_numbers<[1], [0], [0], [1], [0, 0, 1, 1], [], []>} : vector<8x16xf32>, vector<16x16xf32>, vector<8x16xf32> -> vector<8x16xf32>
    %39 = arith.addf %37, %38 : vector<8x16xf32>
    %40 = math.tanh %39 : vector<8x16xf32>
    %41 = arith.index_cast %c2_i32 : i32 to index
    %c0_27 = arith.constant 0 : index
    %c0_28 = arith.constant 0 : index
    %42 = vector.load %arg11[%41, %c0_27, %c0_28] : memref<8x8x16xf32, #tpu.memory_space<vmem>>, vector<1x8x16xf32>
    %43 = vector.shape_cast %42 : vector<1x8x16xf32> to vector<8x16xf32>
    %44 = vector.shape_cast %40 : vector<8x16xf32> to vector<1x8x16xf32>
    tpu.vector_store %arg11[%41, %c0_27, %c0_28], %44 {strides = array<i32>} : memref<8x8x16xf32, #tpu.memory_space<vmem>>, vector<1x8x16xf32>,
    %c3_i32 = arith.constant 3 : i32
    %45 = arith.index_cast %c3_i32 : i32 to index
    %c0_29 = arith.constant 0 : index
    %c0_30 = arith.constant 0 : index
    %46 = vector.load %arg10[%45, %c0_29, %c0_30] : memref<8x8x32xf32, #tpu.memory_space<vmem>>, vector<1x8x32xf32>
    %47 = vector.shape_cast %46 : vector<1x8x32xf32> to vector<8x32xf32>
    %48 = vector.extract_strided_slice %47 {offsets = [0, 0], sizes = [8, 16], strides = [1, 1]} : vector<8x32xf32> to vector<8x16xf32>
    %cst_31 = arith.constant dense<0.000000e+00> : vector<8x16xf32>
    %49 = tpu.matmul %40, %9, %cst_31 {dimension_numbers = #tpu.dot_dimension_numbers<[1], [0], [0], [1], [0, 0, 1, 1], [], []>} : vector<8x16xf32>, vector<16x16xf32>, vector<8x16xf32> -> vector<8x16xf32>
    %50 = arith.addf %48, %49 : vector<8x16xf32>
    %51 = math.tanh %50 : vector<8x16xf32>
    %52 = arith.index_cast %c3_i32 : i32 to index
    %c0_32 = arith.constant 0 : index
    %c0_33 = arith.constant 0 : index
    %53 = vector.load %arg11[%52, %c0_32, %c0_33] : memref<8x8x16xf32, #tpu.memory_space<vmem>>, vector<1x8x16xf32>
    %54 = vector.shape_cast %53 : vector<1x8x16xf32> to vector<8x16xf32>
    %55 = vector.shape_cast %51 : vector<8x16xf32> to vector<1x8x16xf32>
    tpu.vector_store %arg11[%52, %c0_32, %c0_33], %55 {strides = array<i32>} : memref<8x8x16xf32, #tpu.memory_space<vmem>>, vector<1x8x16xf32>,
    %c4_i32 = arith.constant 4 : i32
    %56 = arith.index_cast %c4_i32 : i32 to index
    %c0_34 = arith.constant 0 : index
    %c0_35 = arith.constant 0 : index
    %57 = vector.load %arg10[%56, %c0_34, %c0_35] : memref<8x8x32xf32, #tpu.memory_space<vmem>>, vector<1x8x32xf32>
    %58 = vector.shape_cast %57 : vector<1x8x32xf32> to vector<8x32xf32>
    %59 = vector.extract_strided_slice %58 {offsets = [0, 0], sizes = [8, 16], strides = [1, 1]} : vector<8x32xf32> to vector<8x16xf32>
    %cst_36 = arith.constant dense<0.000000e+00> : vector<8x16xf32>
    %60 = tpu.matmul %51, %9, %cst_36 {dimension_numbers = #tpu.dot_dimension_numbers<[1], [0], [0], [1], [0, 0, 1, 1], [], []>} : vector<8x16xf32>, vector<16x16xf32>, vector<8x16xf32> -> vector<8x16xf32>
    %61 = arith.addf %59, %60 : vector<8x16xf32>
    %62 = math.tanh %61 : vector<8x16xf32>
    %63 = arith.index_cast %c4_i32 : i32 to index
    %c0_37 = arith.constant 0 : index
    %c0_38 = arith.constant 0 : index
    %64 = vector.load %arg11[%63, %c0_37, %c0_38] : memref<8x8x16xf32, #tpu.memory_space<vmem>>, vector<1x8x16xf32>
    %65 = vector.shape_cast %64 : vector<1x8x16xf32> to vector<8x16xf32>
    %66 = vector.shape_cast %62 : vector<8x16xf32> to vector<1x8x16xf32>
    tpu.vector_store %arg11[%63, %c0_37, %c0_38], %66 {strides = array<i32>} : memref<8x8x16xf32, #tpu.memory_space<vmem>>, vector<1x8x16xf32>,
    %c5_i32 = arith.constant 5 : i32
    %67 = arith.index_cast %c5_i32 : i32 to index
    %c0_39 = arith.constant 0 : index
    %c0_40 = arith.constant 0 : index
    %68 = vector.load %arg10[%67, %c0_39, %c0_40] : memref<8x8x32xf32, #tpu.memory_space<vmem>>, vector<1x8x32xf32>
    %69 = vector.shape_cast %68 : vector<1x8x32xf32> to vector<8x32xf32>
    %70 = vector.extract_strided_slice %69 {offsets = [0, 0], sizes = [8, 16], strides = [1, 1]} : vector<8x32xf32> to vector<8x16xf32>
    %cst_41 = arith.constant dense<0.000000e+00> : vector<8x16xf32>
    %71 = tpu.matmul %62, %9, %cst_41 {dimension_numbers = #tpu.dot_dimension_numbers<[1], [0], [0], [1], [0, 0, 1, 1], [], []>} : vector<8x16xf32>, vector<16x16xf32>, vector<8x16xf32> -> vector<8x16xf32>
    %72 = arith.addf %70, %71 : vector<8x16xf32>
    %73 = math.tanh %72 : vector<8x16xf32>
    %74 = arith.index_cast %c5_i32 : i32 to index
    %c0_42 = arith.constant 0 : index
    %c0_43 = arith.constant 0 : index
    %75 = vector.load %arg11[%74, %c0_42, %c0_43] : memref<8x8x16xf32, #tpu.memory_space<vmem>>, vector<1x8x16xf32>
    %76 = vector.shape_cast %75 : vector<1x8x16xf32> to vector<8x16xf32>
    %77 = vector.shape_cast %73 : vector<8x16xf32> to vector<1x8x16xf32>
    tpu.vector_store %arg11[%74, %c0_42, %c0_43], %77 {strides = array<i32>} : memref<8x8x16xf32, #tpu.memory_space<vmem>>, vector<1x8x16xf32>,
    %c6_i32 = arith.constant 6 : i32
    %78 = arith.index_cast %c6_i32 : i32 to index
    %c0_44 = arith.constant 0 : index
    %c0_45 = arith.constant 0 : index
    %79 = vector.load %arg10[%78, %c0_44, %c0_45] : memref<8x8x32xf32, #tpu.memory_space<vmem>>, vector<1x8x32xf32>
    %80 = vector.shape_cast %79 : vector<1x8x32xf32> to vector<8x32xf32>
    %81 = vector.extract_strided_slice %80 {offsets = [0, 0], sizes = [8, 16], strides = [1, 1]} : vector<8x32xf32> to vector<8x16xf32>
    %cst_46 = arith.constant dense<0.000000e+00> : vector<8x16xf32>
    %82 = tpu.matmul %73, %9, %cst_46 {dimension_numbers = #tpu.dot_dimension_numbers<[1], [0], [0], [1], [0, 0, 1, 1], [], []>} : vector<8x16xf32>, vector<16x16xf32>, vector<8x16xf32> -> vector<8x16xf32>
    %83 = arith.addf %81, %82 : vector<8x16xf32>
    %84 = math.tanh %83 : vector<8x16xf32>
    %85 = arith.index_cast %c6_i32 : i32 to index
    %c0_47 = arith.constant 0 : index
    %c0_48 = arith.constant 0 : index
    %86 = vector.load %arg11[%85, %c0_47, %c0_48] : memref<8x8x16xf32, #tpu.memory_space<vmem>>, vector<1x8x16xf32>
    %87 = vector.shape_cast %86 : vector<1x8x16xf32> to vector<8x16xf32>
    %88 = vector.shape_cast %84 : vector<8x16xf32> to vector<1x8x16xf32>
    tpu.vector_store %arg11[%85, %c0_47, %c0_48], %88 {strides = array<i32>} : memref<8x8x16xf32, #tpu.memory_space<vmem>>, vector<1x8x16xf32>,
    %c7_i32 = arith.constant 7 : i32
    %89 = arith.index_cast %c7_i32 : i32 to index
    %c0_49 = arith.constant 0 : index
    %c0_50 = arith.constant 0 : index
    %90 = vector.load %arg10[%89, %c0_49, %c0_50] : memref<8x8x32xf32, #tpu.memory_space<vmem>>, vector<1x8x32xf32>
    %91 = vector.shape_cast %90 : vector<1x8x32xf32> to vector<8x32xf32>
    %92 = vector.extract_strided_slice %91 {offsets = [0, 0], sizes = [8, 16], strides = [1, 1]} : vector<8x32xf32> to vector<8x16xf32>
    %cst_51 = arith.constant dense<0.000000e+00> : vector<8x16xf32>
    %93 = tpu.matmul %84, %9, %cst_51 {dimension_numbers = #tpu.dot_dimension_numbers<[1], [0], [0], [1], [0, 0, 1, 1], [], []>} : vector<8x16xf32>, vector<16x16xf32>, vector<8x16xf32> -> vector<8x16xf32>
    %94 = arith.addf %92, %93 : vector<8x16xf32>
    %95 = math.tanh %94 : vector<8x16xf32>
    %96 = arith.index_cast %c7_i32 : i32 to index
    %c0_52 = arith.constant 0 : index
    %c0_53 = arith.constant 0 : index
    %97 = vector.load %arg11[%96, %c0_52, %c0_53] : memref<8x8x16xf32, #tpu.memory_space<vmem>>, vector<1x8x16xf32>
    %98 = vector.shape_cast %97 : vector<1x8x16xf32> to vector<8x16xf32>
    %99 = vector.shape_cast %95 : vector<8x16xf32> to vector<1x8x16xf32>
    tpu.vector_store %arg11[%96, %c0_52, %c0_53], %99 {strides = array<i32>} : memref<8x8x16xf32, #tpu.memory_space<vmem>>, vector<1x8x16xf32>,
    %c8_i32 = arith.constant 8 : i32
    %c0_i32_54 = arith.constant 0 : i32
    %c7_i32_55 = arith.constant 7 : i32
    %100 = arith.subi %c7_i32_55, %c0_i32_54 : i32
    %101 = arith.index_cast %100 : i32 to index
    %c0_56 = arith.constant 0 : index
    %c0_57 = arith.constant 0 : index
    %102 = vector.load %arg10[%101, %c0_56, %c0_57] : memref<8x8x32xf32, #tpu.memory_space<vmem>>, vector<1x8x32xf32>
    %103 = vector.shape_cast %102 : vector<1x8x32xf32> to vector<8x32xf32>
    %104 = vector.extract_strided_slice %103 {offsets = [0, 16], sizes = [8, 16], strides = [1, 1]} : vector<8x32xf32> to vector<8x16xf32>
    %cst_58 = arith.constant dense<0.000000e+00> : vector<8x16xf32>
    %105 = tpu.matmul %11, %10, %cst_58 {dimension_numbers = #tpu.dot_dimension_numbers<[1], [0], [0], [1], [0, 0, 1, 1], [], []>} : vector<8x16xf32>, vector<16x16xf32>, vector<8x16xf32> -> vector<8x16xf32>
    %106 = arith.addf %104, %105 : vector<8x16xf32>
    %107 = math.tanh %106 : vector<8x16xf32>
    %108 = arith.index_cast %100 : i32 to index
    %c0_59 = arith.constant 0 : index
    %c0_60 = arith.constant 0 : index
    %109 = vector.load %arg12[%108, %c0_59, %c0_60] : memref<8x8x16xf32, #tpu.memory_space<vmem>>, vector<1x8x16xf32>
    %110 = vector.shape_cast %109 : vector<1x8x16xf32> to vector<8x16xf32>
    %111 = vector.shape_cast %107 : vector<8x16xf32> to vector<1x8x16xf32>
    tpu.vector_store %arg12[%108, %c0_59, %c0_60], %111 {strides = array<i32>} : memref<8x8x16xf32, #tpu.memory_space<vmem>>, vector<1x8x16xf32>,
    %c1_i32_61 = arith.constant 1 : i32
    %c7_i32_62 = arith.constant 7 : i32
    %112 = arith.subi %c7_i32_62, %c1_i32_61 : i32
    %113 = arith.index_cast %112 : i32 to index
    %c0_63 = arith.constant 0 : index
    %c0_64 = arith.constant 0 : index
    %114 = vector.load %arg10[%113, %c0_63, %c0_64] : memref<8x8x32xf32, #tpu.memory_space<vmem>>, vector<1x8x32xf32>
    %115 = vector.shape_cast %114 : vector<1x8x32xf32> to vector<8x32xf32>
    %116 = vector.extract_strided_slice %115 {offsets = [0, 16], sizes = [8, 16], strides = [1, 1]} : vector<8x32xf32> to vector<8x16xf32>
    %cst_65 = arith.constant dense<0.000000e+00> : vector<8x16xf32>
    %117 = tpu.matmul %107, %10, %cst_65 {dimension_numbers = #tpu.dot_dimension_numbers<[1], [0], [0], [1], [0, 0, 1, 1], [], []>} : vector<8x16xf32>, vector<16x16xf32>, vector<8x16xf32> -> vector<8x16xf32>
    %118 = arith.addf %116, %117 : vector<8x16xf32>
    %119 = math.tanh %118 : vector<8x16xf32>
    %120 = arith.index_cast %112 : i32 to index
    %c0_66 = arith.constant 0 : index
    %c0_67 = arith.constant 0 : index
    %121 = vector.load %arg12[%120, %c0_66, %c0_67] : memref<8x8x16xf32, #tpu.memory_space<vmem>>, vector<1x8x16xf32>
    %122 = vector.shape_cast %121 : vector<1x8x16xf32> to vector<8x16xf32>
    %123 = vector.shape_cast %119 : vector<8x16xf32> to vector<1x8x16xf32>
    tpu.vector_store %arg12[%120, %c0_66, %c0_67], %123 {strides = array<i32>} : memref<8x8x16xf32, #tpu.memory_space<vmem>>, vector<1x8x16xf32>,
    %c2_i32_68 = arith.constant 2 : i32
    %c7_i32_69 = arith.constant 7 : i32
    %124 = arith.subi %c7_i32_69, %c2_i32_68 : i32
    %125 = arith.index_cast %124 : i32 to index
    %c0_70 = arith.constant 0 : index
    %c0_71 = arith.constant 0 : index
    %126 = vector.load %arg10[%125, %c0_70, %c0_71] : memref<8x8x32xf32, #tpu.memory_space<vmem>>, vector<1x8x32xf32>
    %127 = vector.shape_cast %126 : vector<1x8x32xf32> to vector<8x32xf32>
    %128 = vector.extract_strided_slice %127 {offsets = [0, 16], sizes = [8, 16], strides = [1, 1]} : vector<8x32xf32> to vector<8x16xf32>
    %cst_72 = arith.constant dense<0.000000e+00> : vector<8x16xf32>
    %129 = tpu.matmul %119, %10, %cst_72 {dimension_numbers = #tpu.dot_dimension_numbers<[1], [0], [0], [1], [0, 0, 1, 1], [], []>} : vector<8x16xf32>, vector<16x16xf32>, vector<8x16xf32> -> vector<8x16xf32>
    %130 = arith.addf %128, %129 : vector<8x16xf32>
    %131 = math.tanh %130 : vector<8x16xf32>
    %132 = arith.index_cast %124 : i32 to index
    %c0_73 = arith.constant 0 : index
    %c0_74 = arith.constant 0 : index
    %133 = vector.load %arg12[%132, %c0_73, %c0_74] : memref<8x8x16xf32, #tpu.memory_space<vmem>>, vector<1x8x16xf32>
    %134 = vector.shape_cast %133 : vector<1x8x16xf32> to vector<8x16xf32>
    %135 = vector.shape_cast %131 : vector<8x16xf32> to vector<1x8x16xf32>
    tpu.vector_store %arg12[%132, %c0_73, %c0_74], %135 {strides = array<i32>} : memref<8x8x16xf32, #tpu.memory_space<vmem>>, vector<1x8x16xf32>,
    %c3_i32_75 = arith.constant 3 : i32
    %c7_i32_76 = arith.constant 7 : i32
    %136 = arith.subi %c7_i32_76, %c3_i32_75 : i32
    %137 = arith.index_cast %136 : i32 to index
    %c0_77 = arith.constant 0 : index
    %c0_78 = arith.constant 0 : index
    %138 = vector.load %arg10[%137, %c0_77, %c0_78] : memref<8x8x32xf32, #tpu.memory_space<vmem>>, vector<1x8x32xf32>
    %139 = vector.shape_cast %138 : vector<1x8x32xf32> to vector<8x32xf32>
    %140 = vector.extract_strided_slice %139 {offsets = [0, 16], sizes = [8, 16], strides = [1, 1]} : vector<8x32xf32> to vector<8x16xf32>
    %cst_79 = arith.constant dense<0.000000e+00> : vector<8x16xf32>
    %141 = tpu.matmul %131, %10, %cst_79 {dimension_numbers = #tpu.dot_dimension_numbers<[1], [0], [0], [1], [0, 0, 1, 1], [], []>} : vector<8x16xf32>, vector<16x16xf32>, vector<8x16xf32> -> vector<8x16xf32>
    %142 = arith.addf %140, %141 : vector<8x16xf32>
    %143 = math.tanh %142 : vector<8x16xf32>
    %144 = arith.index_cast %136 : i32 to index
    %c0_80 = arith.constant 0 : index
    %c0_81 = arith.constant 0 : index
    %145 = vector.load %arg12[%144, %c0_80, %c0_81] : memref<8x8x16xf32, #tpu.memory_space<vmem>>, vector<1x8x16xf32>
    %146 = vector.shape_cast %145 : vector<1x8x16xf32> to vector<8x16xf32>
    %147 = vector.shape_cast %143 : vector<8x16xf32> to vector<1x8x16xf32>
    tpu.vector_store %arg12[%144, %c0_80, %c0_81], %147 {strides = array<i32>} : memref<8x8x16xf32, #tpu.memory_space<vmem>>, vector<1x8x16xf32>,
    %c4_i32_82 = arith.constant 4 : i32
    %c7_i32_83 = arith.constant 7 : i32
    %148 = arith.subi %c7_i32_83, %c4_i32_82 : i32
    %149 = arith.index_cast %148 : i32 to index
    %c0_84 = arith.constant 0 : index
    %c0_85 = arith.constant 0 : index
    %150 = vector.load %arg10[%149, %c0_84, %c0_85] : memref<8x8x32xf32, #tpu.memory_space<vmem>>, vector<1x8x32xf32>
    %151 = vector.shape_cast %150 : vector<1x8x32xf32> to vector<8x32xf32>
    %152 = vector.extract_strided_slice %151 {offsets = [0, 16], sizes = [8, 16], strides = [1, 1]} : vector<8x32xf32> to vector<8x16xf32>
    %cst_86 = arith.constant dense<0.000000e+00> : vector<8x16xf32>
    %153 = tpu.matmul %143, %10, %cst_86 {dimension_numbers = #tpu.dot_dimension_numbers<[1], [0], [0], [1], [0, 0, 1, 1], [], []>} : vector<8x16xf32>, vector<16x16xf32>, vector<8x16xf32> -> vector<8x16xf32>
    %154 = arith.addf %152, %153 : vector<8x16xf32>
    %155 = math.tanh %154 : vector<8x16xf32>
    %156 = arith.index_cast %148 : i32 to index
    %c0_87 = arith.constant 0 : index
    %c0_88 = arith.constant 0 : index
    %157 = vector.load %arg12[%156, %c0_87, %c0_88] : memref<8x8x16xf32, #tpu.memory_space<vmem>>, vector<1x8x16xf32>
    %158 = vector.shape_cast %157 : vector<1x8x16xf32> to vector<8x16xf32>
    %159 = vector.shape_cast %155 : vector<8x16xf32> to vector<1x8x16xf32>
    tpu.vector_store %arg12[%156, %c0_87, %c0_88], %159 {strides = array<i32>} : memref<8x8x16xf32, #tpu.memory_space<vmem>>, vector<1x8x16xf32>,
    %c5_i32_89 = arith.constant 5 : i32
    %c7_i32_90 = arith.constant 7 : i32
    %160 = arith.subi %c7_i32_90, %c5_i32_89 : i32
    %161 = arith.index_cast %160 : i32 to index
    %c0_91 = arith.constant 0 : index
    %c0_92 = arith.constant 0 : index
    %162 = vector.load %arg10[%161, %c0_91, %c0_92] : memref<8x8x32xf32, #tpu.memory_space<vmem>>, vector<1x8x32xf32>
    %163 = vector.shape_cast %162 : vector<1x8x32xf32> to vector<8x32xf32>
    %164 = vector.extract_strided_slice %163 {offsets = [0, 16], sizes = [8, 16], strides = [1, 1]} : vector<8x32xf32> to vector<8x16xf32>
    %cst_93 = arith.constant dense<0.000000e+00> : vector<8x16xf32>
    %165 = tpu.matmul %155, %10, %cst_93 {dimension_numbers = #tpu.dot_dimension_numbers<[1], [0], [0], [1], [0, 0, 1, 1], [], []>} : vector<8x16xf32>, vector<16x16xf32>, vector<8x16xf32> -> vector<8x16xf32>
    %166 = arith.addf %164, %165 : vector<8x16xf32>
    %167 = math.tanh %166 : vector<8x16xf32>
    %168 = arith.index_cast %160 : i32 to index
    %c0_94 = arith.constant 0 : index
    %c0_95 = arith.constant 0 : index
    %169 = vector.load %arg12[%168, %c0_94, %c0_95] : memref<8x8x16xf32, #tpu.memory_space<vmem>>, vector<1x8x16xf32>
    %170 = vector.shape_cast %169 : vector<1x8x16xf32> to vector<8x16xf32>
    %171 = vector.shape_cast %167 : vector<8x16xf32> to vector<1x8x16xf32>
    tpu.vector_store %arg12[%168, %c0_94, %c0_95], %171 {strides = array<i32>} : memref<8x8x16xf32, #tpu.memory_space<vmem>>, vector<1x8x16xf32>,
    %c6_i32_96 = arith.constant 6 : i32
    %c7_i32_97 = arith.constant 7 : i32
    %172 = arith.subi %c7_i32_97, %c6_i32_96 : i32
    %173 = arith.index_cast %172 : i32 to index
    %c0_98 = arith.constant 0 : index
    %c0_99 = arith.constant 0 : index
    %174 = vector.load %arg10[%173, %c0_98, %c0_99] : memref<8x8x32xf32, #tpu.memory_space<vmem>>, vector<1x8x32xf32>
    %175 = vector.shape_cast %174 : vector<1x8x32xf32> to vector<8x32xf32>
    %176 = vector.extract_strided_slice %175 {offsets = [0, 16], sizes = [8, 16], strides = [1, 1]} : vector<8x32xf32> to vector<8x16xf32>
    %cst_100 = arith.constant dense<0.000000e+00> : vector<8x16xf32>
    %177 = tpu.matmul %167, %10, %cst_100 {dimension_numbers = #tpu.dot_dimension_numbers<[1], [0], [0], [1], [0, 0, 1, 1], [], []>} : vector<8x16xf32>, vector<16x16xf32>, vector<8x16xf32> -> vector<8x16xf32>
    %178 = arith.addf %176, %177 : vector<8x16xf32>
    %179 = math.tanh %178 : vector<8x16xf32>
    %180 = arith.index_cast %172 : i32 to index
    %c0_101 = arith.constant 0 : index
    %c0_102 = arith.constant 0 : index
    %181 = vector.load %arg12[%180, %c0_101, %c0_102] : memref<8x8x16xf32, #tpu.memory_space<vmem>>, vector<1x8x16xf32>
    %182 = vector.shape_cast %181 : vector<1x8x16xf32> to vector<8x16xf32>
    %183 = vector.shape_cast %179 : vector<8x16xf32> to vector<1x8x16xf32>
    tpu.vector_store %arg12[%180, %c0_101, %c0_102], %183 {strides = array<i32>} : memref<8x8x16xf32, #tpu.memory_space<vmem>>, vector<1x8x16xf32>,
    %c7_i32_103 = arith.constant 7 : i32
    %c7_i32_104 = arith.constant 7 : i32
    %184 = arith.subi %c7_i32_104, %c7_i32_103 : i32
    %185 = arith.index_cast %184 : i32 to index
    %c0_105 = arith.constant 0 : index
    %c0_106 = arith.constant 0 : index
    %186 = vector.load %arg10[%185, %c0_105, %c0_106] : memref<8x8x32xf32, #tpu.memory_space<vmem>>, vector<1x8x32xf32>
    %187 = vector.shape_cast %186 : vector<1x8x32xf32> to vector<8x32xf32>
    %188 = vector.extract_strided_slice %187 {offsets = [0, 16], sizes = [8, 16], strides = [1, 1]} : vector<8x32xf32> to vector<8x16xf32>
    %cst_107 = arith.constant dense<0.000000e+00> : vector<8x16xf32>
    %189 = tpu.matmul %179, %10, %cst_107 {dimension_numbers = #tpu.dot_dimension_numbers<[1], [0], [0], [1], [0, 0, 1, 1], [], []>} : vector<8x16xf32>, vector<16x16xf32>, vector<8x16xf32> -> vector<8x16xf32>
    %190 = arith.addf %188, %189 : vector<8x16xf32>
    %191 = math.tanh %190 : vector<8x16xf32>
    %192 = arith.index_cast %184 : i32 to index
    %c0_108 = arith.constant 0 : index
    %c0_109 = arith.constant 0 : index
    %193 = vector.load %arg12[%192, %c0_108, %c0_109] : memref<8x8x16xf32, #tpu.memory_space<vmem>>, vector<1x8x16xf32>
    %194 = vector.shape_cast %193 : vector<1x8x16xf32> to vector<8x16xf32>
    %195 = vector.shape_cast %191 : vector<8x16xf32> to vector<1x8x16xf32>
    tpu.vector_store %arg12[%192, %c0_108, %c0_109], %195 {strides = array<i32>} : memref<8x8x16xf32, #tpu.memory_space<vmem>>, vector<1x8x16xf32>,
    %c8_i32_110 = arith.constant 8 : i32
    %c0_111 = arith.constant 0 : index
    %c0_112 = arith.constant 0 : index
    %c0_113 = arith.constant 0 : index
    %196 = vector.load %arg11[%c0_111, %c0_112, %c0_113] : memref<8x8x16xf32, #tpu.memory_space<vmem>>, vector<8x8x16xf32>
    %c0_114 = arith.constant 0 : index
    %c0_115 = arith.constant 0 : index
    %c0_116 = arith.constant 0 : index
    %197 = vector.load %arg12[%c0_114, %c0_115, %c0_116] : memref<8x8x16xf32, #tpu.memory_space<vmem>>, vector<8x8x16xf32>
    %c0_117 = arith.constant 0 : index
    %c0_118 = arith.constant 0 : index
    %198 = vector.load %arg6[%c0_117, %c0_118] : memref<32x8xf32, #tpu.memory_space<vmem>>, vector<16x8xf32>
    %c16 = arith.constant 16 : index
    %c0_119 = arith.constant 0 : index
    %199 = vector.load %arg6[%c16, %c0_119] : memref<32x8xf32, #tpu.memory_space<vmem>>, vector<16x8xf32>
    %200 = vector.shape_cast %196 : vector<8x8x16xf32> to vector<64x16xf32>
    %cst_120 = arith.constant dense<0.000000e+00> : vector<64x8xf32>
    %201 = tpu.matmul %200, %198, %cst_120 {dimension_numbers = #tpu.dot_dimension_numbers<[1], [0], [0], [1], [0, 0, 1, 1], [], []>} : vector<64x16xf32>, vector<16x8xf32>, vector<64x8xf32> -> vector<64x8xf32>
    %202 = vector.shape_cast %197 : vector<8x8x16xf32> to vector<64x16xf32>
    %cst_121 = arith.constant dense<0.000000e+00> : vector<64x8xf32>
    %203 = tpu.matmul %202, %199, %cst_121 {dimension_numbers = #tpu.dot_dimension_numbers<[1], [0], [0], [1], [0, 0, 1, 1], [], []>} : vector<64x16xf32>, vector<16x8xf32>, vector<64x8xf32> -> vector<64x8xf32>
    %204 = arith.addf %201, %203 : vector<64x8xf32>
    %205 = vector.shape_cast %204 : vector<64x8xf32> to vector<8x8x8xf32>
    %cst_122 = arith.constant dense<0xFF800000> : vector<8x8xf32>
    %206 = vector.multi_reduction <maximumf>, %205, %cst_122 [0] : vector<8x8x8xf32> to vector<8x8xf32>
    %207 = vector.shape_cast %206 : vector<8x8xf32> to vector<1x8x8xf32>
    %208 = vector.broadcast %207 : vector<1x8x8xf32> to vector<8x8x8xf32>
    %209 = arith.subf %205, %208 : vector<8x8x8xf32>
    %210 = math.exp %209 : vector<8x8x8xf32>
    %cst_123 = arith.constant dense<0.000000e+00> : vector<8x8xf32>
    %211 = vector.multi_reduction <add>, %210, %cst_123 [0] : vector<8x8x8xf32> to vector<8x8xf32>
    %212 = vector.shape_cast %211 : vector<8x8xf32> to vector<1x8x8xf32>
    %213 = tpu.reciprocal %212 {approx = true} : vector<1x8x8xf32> -> vector<1x8x8xf32>
    %214 = vector.broadcast %213 : vector<1x8x8xf32> to vector<8x8x8xf32>
    %215 = arith.mulf %210, %214 : vector<8x8x8xf32>
    %216 = vector.extract_strided_slice %215 {offsets = [0, 0, 0], sizes = [8, 1, 8], strides = [1, 1, 1]} : vector<8x8x8xf32> to vector<8x1x8xf32>
    %217 = vector.shape_cast %216 : vector<8x1x8xf32> to vector<8x8xf32>
    %218 = vector.extract_strided_slice %196 {offsets = [0, 0, 0], sizes = [8, 1, 16], strides = [1, 1, 1]} : vector<8x8x16xf32> to vector<8x1x16xf32>
    %219 = vector.shape_cast %218 : vector<8x1x16xf32> to vector<8x16xf32>
    %220 = vector.extract_strided_slice %197 {offsets = [0, 0, 0], sizes = [8, 1, 16], strides = [1, 1, 1]} : vector<8x8x16xf32> to vector<8x1x16xf32>
    %221 = vector.shape_cast %220 : vector<8x1x16xf32> to vector<8x16xf32>
    %222 = tpu.concatenate %219, %221 in 1 : vector<8x16xf32>, vector<8x16xf32> -> vector<8x32xf32>
    %cst_124 = arith.constant dense<0.000000e+00> : vector<8x32xf32>
    %223 = tpu.matmul %217, %222, %cst_124 {dimension_numbers = #tpu.dot_dimension_numbers<[0], [0], [1], [1], [0, 1, 1, 1], [], []>} : vector<8x8xf32>, vector<8x32xf32>, vector<8x32xf32> -> vector<8x32xf32>
    %224 = vector.extract_strided_slice %215 {offsets = [0, 1, 0], sizes = [8, 1, 8], strides = [1, 1, 1]} : vector<8x8x8xf32> to vector<8x1x8xf32>
    %225 = vector.shape_cast %224 : vector<8x1x8xf32> to vector<8x8xf32>
    %226 = vector.extract_strided_slice %196 {offsets = [0, 1, 0], sizes = [8, 1, 16], strides = [1, 1, 1]} : vector<8x8x16xf32> to vector<8x1x16xf32>
    %227 = vector.shape_cast %226 : vector<8x1x16xf32> to vector<8x16xf32>
    %228 = vector.extract_strided_slice %197 {offsets = [0, 1, 0], sizes = [8, 1, 16], strides = [1, 1, 1]} : vector<8x8x16xf32> to vector<8x1x16xf32>
    %229 = vector.shape_cast %228 : vector<8x1x16xf32> to vector<8x16xf32>
    %230 = tpu.concatenate %227, %229 in 1 : vector<8x16xf32>, vector<8x16xf32> -> vector<8x32xf32>
    %cst_125 = arith.constant dense<0.000000e+00> : vector<8x32xf32>
    %231 = tpu.matmul %225, %230, %cst_125 {dimension_numbers = #tpu.dot_dimension_numbers<[0], [0], [1], [1], [0, 1, 1, 1], [], []>} : vector<8x8xf32>, vector<8x32xf32>, vector<8x32xf32> -> vector<8x32xf32>
    %232 = vector.extract_strided_slice %215 {offsets = [0, 2, 0], sizes = [8, 1, 8], strides = [1, 1, 1]} : vector<8x8x8xf32> to vector<8x1x8xf32>
    %233 = vector.shape_cast %232 : vector<8x1x8xf32> to vector<8x8xf32>
    %234 = vector.extract_strided_slice %196 {offsets = [0, 2, 0], sizes = [8, 1, 16], strides = [1, 1, 1]} : vector<8x8x16xf32> to vector<8x1x16xf32>
    %235 = vector.shape_cast %234 : vector<8x1x16xf32> to vector<8x16xf32>
    %236 = vector.extract_strided_slice %197 {offsets = [0, 2, 0], sizes = [8, 1, 16], strides = [1, 1, 1]} : vector<8x8x16xf32> to vector<8x1x16xf32>
    %237 = vector.shape_cast %236 : vector<8x1x16xf32> to vector<8x16xf32>
    %238 = tpu.concatenate %235, %237 in 1 : vector<8x16xf32>, vector<8x16xf32> -> vector<8x32xf32>
    %cst_126 = arith.constant dense<0.000000e+00> : vector<8x32xf32>
    %239 = tpu.matmul %233, %238, %cst_126 {dimension_numbers = #tpu.dot_dimension_numbers<[0], [0], [1], [1], [0, 1, 1, 1], [], []>} : vector<8x8xf32>, vector<8x32xf32>, vector<8x32xf32> -> vector<8x32xf32>
    %240 = vector.extract_strided_slice %215 {offsets = [0, 3, 0], sizes = [8, 1, 8], strides = [1, 1, 1]} : vector<8x8x8xf32> to vector<8x1x8xf32>
    %241 = vector.shape_cast %240 : vector<8x1x8xf32> to vector<8x8xf32>
    %242 = vector.extract_strided_slice %196 {offsets = [0, 3, 0], sizes = [8, 1, 16], strides = [1, 1, 1]} : vector<8x8x16xf32> to vector<8x1x16xf32>
    %243 = vector.shape_cast %242 : vector<8x1x16xf32> to vector<8x16xf32>
    %244 = vector.extract_strided_slice %197 {offsets = [0, 3, 0], sizes = [8, 1, 16], strides = [1, 1, 1]} : vector<8x8x16xf32> to vector<8x1x16xf32>
    %245 = vector.shape_cast %244 : vector<8x1x16xf32> to vector<8x16xf32>
    %246 = tpu.concatenate %243, %245 in 1 : vector<8x16xf32>, vector<8x16xf32> -> vector<8x32xf32>
    %cst_127 = arith.constant dense<0.000000e+00> : vector<8x32xf32>
    %247 = tpu.matmul %241, %246, %cst_127 {dimension_numbers = #tpu.dot_dimension_numbers<[0], [0], [1], [1], [0, 1, 1, 1], [], []>} : vector<8x8xf32>, vector<8x32xf32>, vector<8x32xf32> -> vector<8x32xf32>
    %248 = vector.extract_strided_slice %215 {offsets = [0, 4, 0], sizes = [8, 1, 8], strides = [1, 1, 1]} : vector<8x8x8xf32> to vector<8x1x8xf32>
    %249 = vector.shape_cast %248 : vector<8x1x8xf32> to vector<8x8xf32>
    %250 = vector.extract_strided_slice %196 {offsets = [0, 4, 0], sizes = [8, 1, 16], strides = [1, 1, 1]} : vector<8x8x16xf32> to vector<8x1x16xf32>
    %251 = vector.shape_cast %250 : vector<8x1x16xf32> to vector<8x16xf32>
    %252 = vector.extract_strided_slice %197 {offsets = [0, 4, 0], sizes = [8, 1, 16], strides = [1, 1, 1]} : vector<8x8x16xf32> to vector<8x1x16xf32>
    %253 = vector.shape_cast %252 : vector<8x1x16xf32> to vector<8x16xf32>
    %254 = tpu.concatenate %251, %253 in 1 : vector<8x16xf32>, vector<8x16xf32> -> vector<8x32xf32>
    %cst_128 = arith.constant dense<0.000000e+00> : vector<8x32xf32>
    %255 = tpu.matmul %249, %254, %cst_128 {dimension_numbers = #tpu.dot_dimension_numbers<[0], [0], [1], [1], [0, 1, 1, 1], [], []>} : vector<8x8xf32>, vector<8x32xf32>, vector<8x32xf32> -> vector<8x32xf32>
    %256 = vector.extract_strided_slice %215 {offsets = [0, 5, 0], sizes = [8, 1, 8], strides = [1, 1, 1]} : vector<8x8x8xf32> to vector<8x1x8xf32>
    %257 = vector.shape_cast %256 : vector<8x1x8xf32> to vector<8x8xf32>
    %258 = vector.extract_strided_slice %196 {offsets = [0, 5, 0], sizes = [8, 1, 16], strides = [1, 1, 1]} : vector<8x8x16xf32> to vector<8x1x16xf32>
    %259 = vector.shape_cast %258 : vector<8x1x16xf32> to vector<8x16xf32>
    %260 = vector.extract_strided_slice %197 {offsets = [0, 5, 0], sizes = [8, 1, 16], strides = [1, 1, 1]} : vector<8x8x16xf32> to vector<8x1x16xf32>
    %261 = vector.shape_cast %260 : vector<8x1x16xf32> to vector<8x16xf32>
    %262 = tpu.concatenate %259, %261 in 1 : vector<8x16xf32>, vector<8x16xf32> -> vector<8x32xf32>
    %cst_129 = arith.constant dense<0.000000e+00> : vector<8x32xf32>
    %263 = tpu.matmul %257, %262, %cst_129 {dimension_numbers = #tpu.dot_dimension_numbers<[0], [0], [1], [1], [0, 1, 1, 1], [], []>} : vector<8x8xf32>, vector<8x32xf32>, vector<8x32xf32> -> vector<8x32xf32>
    %264 = vector.extract_strided_slice %215 {offsets = [0, 6, 0], sizes = [8, 1, 8], strides = [1, 1, 1]} : vector<8x8x8xf32> to vector<8x1x8xf32>
    %265 = vector.shape_cast %264 : vector<8x1x8xf32> to vector<8x8xf32>
    %266 = vector.extract_strided_slice %196 {offsets = [0, 6, 0], sizes = [8, 1, 16], strides = [1, 1, 1]} : vector<8x8x16xf32> to vector<8x1x16xf32>
    %267 = vector.shape_cast %266 : vector<8x1x16xf32> to vector<8x16xf32>
    %268 = vector.extract_strided_slice %197 {offsets = [0, 6, 0], sizes = [8, 1, 16], strides = [1, 1, 1]} : vector<8x8x16xf32> to vector<8x1x16xf32>
    %269 = vector.shape_cast %268 : vector<8x1x16xf32> to vector<8x16xf32>
    %270 = tpu.concatenate %267, %269 in 1 : vector<8x16xf32>, vector<8x16xf32> -> vector<8x32xf32>
    %cst_130 = arith.constant dense<0.000000e+00> : vector<8x32xf32>
    %271 = tpu.matmul %265, %270, %cst_130 {dimension_numbers = #tpu.dot_dimension_numbers<[0], [0], [1], [1], [0, 1, 1, 1], [], []>} : vector<8x8xf32>, vector<8x32xf32>, vector<8x32xf32> -> vector<8x32xf32>
    %272 = vector.extract_strided_slice %215 {offsets = [0, 7, 0], sizes = [8, 1, 8], strides = [1, 1, 1]} : vector<8x8x8xf32> to vector<8x1x8xf32>
    %273 = vector.shape_cast %272 : vector<8x1x8xf32> to vector<8x8xf32>
    %274 = vector.extract_strided_slice %196 {offsets = [0, 7, 0], sizes = [8, 1, 16], strides = [1, 1, 1]} : vector<8x8x16xf32> to vector<8x1x16xf32>
    %275 = vector.shape_cast %274 : vector<8x1x16xf32> to vector<8x16xf32>
    %276 = vector.extract_strided_slice %197 {offsets = [0, 7, 0], sizes = [8, 1, 16], strides = [1, 1, 1]} : vector<8x8x16xf32> to vector<8x1x16xf32>
    %277 = vector.shape_cast %276 : vector<8x1x16xf32> to vector<8x16xf32>
    %278 = tpu.concatenate %275, %277 in 1 : vector<8x16xf32>, vector<8x16xf32> -> vector<8x32xf32>
    %cst_131 = arith.constant dense<0.000000e+00> : vector<8x32xf32>
    %279 = tpu.matmul %273, %278, %cst_131 {dimension_numbers = #tpu.dot_dimension_numbers<[0], [0], [1], [1], [0, 1, 1, 1], [], []>} : vector<8x8xf32>, vector<8x32xf32>, vector<8x32xf32> -> vector<8x32xf32>
    %280 = vector.shape_cast %223 : vector<8x32xf32> to vector<8x1x32xf32>
    %281 = vector.shape_cast %231 : vector<8x32xf32> to vector<8x1x32xf32>
    %282 = vector.shape_cast %239 : vector<8x32xf32> to vector<8x1x32xf32>
    %283 = vector.shape_cast %247 : vector<8x32xf32> to vector<8x1x32xf32>
    %284 = vector.shape_cast %255 : vector<8x32xf32> to vector<8x1x32xf32>
    %285 = vector.shape_cast %263 : vector<8x32xf32> to vector<8x1x32xf32>
    %286 = vector.shape_cast %271 : vector<8x32xf32> to vector<8x1x32xf32>
    %287 = vector.shape_cast %279 : vector<8x32xf32> to vector<8x1x32xf32>
    %288 = tpu.concatenate %280, %281, %282, %283, %284, %285, %286, %287 in 1 : vector<8x1x32xf32>, vector<8x1x32xf32>, vector<8x1x32xf32>, vector<8x1x32xf32>, vector<8x1x32xf32>, vector<8x1x32xf32>, vector<8x1x32xf32>, vector<8x1x32xf32> -> vector<8x8x32xf32>
    %c0_132 = arith.constant 0 : index
    %c0_133 = arith.constant 0 : index
    %c0_134 = arith.constant 0 : index
    %289 = vector.load %arg7[%c0_132, %c0_133, %c0_134] : memref<8x32x8xf32, #tpu.memory_space<vmem>>, vector<8x32x8xf32>
    %cst_135 = arith.constant dense<0.000000e+00> : vector<8x8x8xf32>
    %290 = tpu.matmul %288, %289, %cst_135 {dimension_numbers = #tpu.dot_dimension_numbers<[2], [1], [1], [2], [0, 0, 0, 1, 1, 2], [0], [0]>} : vector<8x8x32xf32>, vector<8x32x8xf32>, vector<8x8x8xf32> -> vector<8x8x8xf32>
    %cst_136 = arith.constant dense<0.000000e+00> : vector<8x8xf32>
    %291 = vector.multi_reduction <add>, %290, %cst_136 [0] : vector<8x8x8xf32> to vector<8x8xf32>
    %c0_137 = arith.constant 0 : index
    %c0_138 = arith.constant 0 : index
    %292 = vector.load %arg8[%c0_137, %c0_138] : memref<1x8xf32, #tpu.memory_space<vmem>>, vector<1x8xf32>
    %293 = vector.broadcast %292 : vector<1x8xf32> to vector<8x8xf32>
    %294 = arith.addf %291, %293 : vector<8x8xf32>
    %c0_139 = arith.constant 0 : index
    %c0_140 = arith.constant 0 : index
    %295 = vector.load %arg9[%c0_139, %c0_140] : memref<8x8xf32, #tpu.memory_space<vmem>>, vector<8x8xf32>
    tpu.vector_store %arg9[%c0_139, %c0_140], %294 {strides = array<i32>} : memref<8x8xf32, #tpu.memory_space<vmem>>, vector<8x8xf32>,
    return
  }
  func.func @transform_0(%arg0: i32) -> (i32, i32, i32) {
    %c0_i32 = arith.constant 0 : i32
    %c0_i32_0 = arith.constant 0 : i32
    %c0_i32_1 = arith.constant 0 : i32
    return %c0_i32, %arg0, %c0_i32_0 : i32, i32, i32
  }
  func.func @transform_1(%arg0: i32) -> (i32, i32) {
    %c0_i32 = arith.constant 0 : i32
    %c0_i32_0 = arith.constant 0 : i32
    %c0_i32_1 = arith.constant 0 : i32
    return %c0_i32, %c0_i32_0 : i32, i32
  }
  func.func @transform_2(%arg0: i32) -> (i32, i32) {
    %c0_i32 = arith.constant 0 : i32
    %c0_i32_0 = arith.constant 0 : i32
    %c0_i32_1 = arith.constant 0 : i32
    return %c0_i32, %c0_i32_0 : i32, i32
  }
  func.func @transform_3(%arg0: i32) -> (i32, i32) {
    %c0_i32 = arith.constant 0 : i32
    %c0_i32_0 = arith.constant 0 : i32
    %c0_i32_1 = arith.constant 0 : i32
    return %c0_i32, %c0_i32_0 : i32, i32
  }
  func.func @transform_4(%arg0: i32) -> (i32, i32) {
    %c0_i32 = arith.constant 0 : i32
    %c0_i32_0 = arith.constant 0 : i32
    %c0_i32_1 = arith.constant 0 : i32
    return %c0_i32, %c0_i32_0 : i32, i32
  }
  func.func @transform_5(%arg0: i32) -> (i32, i32) {
    %c0_i32 = arith.constant 0 : i32
    %c0_i32_0 = arith.constant 0 : i32
    %c0_i32_1 = arith.constant 0 : i32
    return %c0_i32, %c0_i32_0 : i32, i32
  }
  func.func @transform_6(%arg0: i32) -> (i32, i32, i32) {
    %c0_i32 = arith.constant 0 : i32
    %c0_i32_0 = arith.constant 0 : i32
    %c0_i32_1 = arith.constant 0 : i32
    %c0_i32_2 = arith.constant 0 : i32
    return %c0_i32, %c0_i32_0, %c0_i32_1 : i32, i32, i32
  }
  func.func @transform_7(%arg0: i32) -> (i32, i32) {
    %c0_i32 = arith.constant 0 : i32
    %c0_i32_0 = arith.constant 0 : i32
    %c0_i32_1 = arith.constant 0 : i32
    return %c0_i32, %c0_i32_0 : i32, i32
  }
  func.func @transform_8(%arg0: i32) -> (i32, i32) {
    %c0_i32 = arith.constant 0 : i32
    %c0_i32_0 = arith.constant 0 : i32
    return %arg0, %c0_i32 : i32, i32
  }
}

</mosaic_0001>

<llo_original>
// kernel: tpu_custom_call.1
$region0: #{tpu_custom_call.1}
  #allocation0 [shape = 'u32[]', space=smem, size = 0x4, offset = 0x4, fixed_abs, tag = 'smem constant byte address 0x4 - core index']
  #allocation1 [shape = 'u32[72,128]{1,0:T(1,128)}', space=vmem, size = 0x9000, scoped, tag = 'internal scratch']
  #allocation2 [shape = 'f32[8,8,32]{2,1,0:T(8,128)}', space=vmem, size = 0x8000, scoped, tag = 'scratch operand']
  #allocation3 [shape = 'f32[8,8,16]{2,1,0:T(8,128)}', space=vmem, size = 0x8000, scoped, tag = 'scratch operand']
  #allocation4 [shape = 'f32[8,8,16]{2,1,0:T(8,128)}', space=vmem, size = 0x8000, scoped, tag = 'scratch operand']
  %s0 = inlined_call_operand.vmem [shape: f32[8,8,32], index: 0, kind: input, shape index: {}]
  %s1 = inlined_call_operand.vmem [shape: f32[32,32], index: 1, kind: input, shape index: {}]
  %s2 = inlined_call_operand.vmem [shape: f32[1,32], index: 2, kind: input, shape index: {}]
  %s3 = inlined_call_operand.vmem [shape: f32[16,16], index: 3, kind: input, shape index: {}]
  %s4 = inlined_call_operand.vmem [shape: f32[16,16], index: 4, kind: input, shape index: {}]
  %s5 = inlined_call_operand.vmem [shape: f32[32,8], index: 5, kind: input, shape index: {}]
  %s6 = inlined_call_operand.vmem [shape: f32[8,32,8], index: 6, kind: input, shape index: {}]
  %s7 = inlined_call_operand.vmem [shape: f32[1,8], index: 7, kind: input, shape index: {}]
  %s8 = inlined_call_operand.hbm [shape: f32[8,8], index: 8, kind: output, shape index: {}]
  %s9 = sld [smem:[#allocation0]]
  $region42: #{tpu_custom_call.1} parent=0
    _
  %s11 = ssub.s32 1, %s9
  %s12 = scalar_select 0, %s11, %s9
  $region1: #{tpu_custom_call.1} parent=0
    #allocation5 [shape = 'u8[4096]{0}', space=vmem, size = 0x1000, scoped, tag = 'output window, operand 0, single buffered']
    #allocation6 [shape = 's32[1]{0}', space=sflag, size = 0x4, scoped, tag = 'scoped memory for tpu_custom_call.1']
    %13 = vsyncpa [#allocation6], 0
    // Predicated region
    $region2: #{tpu_custom_call.1} parent=1 // pred_check
      _
    $region3: #{tpu_custom_call.1} parent=1 // pred_check_branch
      %15 = sbr.rel (0) target = $region5
    $region4: #{tpu_custom_call.1} parent=1 // pred_region
      _
    $region5: #{tpu_custom_call.1} parent=1 // pred_fallthru
      _
    // Predicated region
    $region6: #{tpu_custom_call.1} parent=1 // pred_check
      _
    $region7: #{tpu_custom_call.1} parent=1 // pred_check_branch
      %17 = sbr.rel (0) target = $region9
    $region8: #{tpu_custom_call.1} parent=1 // pred_region
      _
    $region9: #{tpu_custom_call.1} parent=1 // pred_fallthru
      _
    // Predicated region
    $region10: #{tpu_custom_call.1} parent=1 // pred_check
      _
    $region11: #{tpu_custom_call.1} parent=1 // pred_check_branch
      %19 = sbr.rel (0) target = $region13
    $region12: #{tpu_custom_call.1} parent=1 // pred_region
      _
    $region13: #{tpu_custom_call.1} parent=1 // pred_fallthru
      _
    // Predicated region
    $region14: #{tpu_custom_call.1} parent=1 // pred_check
      _
    $region15: #{tpu_custom_call.1} parent=1 // pred_check_branch
      %21 = sbr.rel (0) target = $region17
    $region16: #{tpu_custom_call.1} parent=1 // pred_region
      _
    $region17: #{tpu_custom_call.1} parent=1 // pred_fallthru
      _
    // Predicated region
    $region18: #{tpu_custom_call.1} parent=1 // pred_check
      _
    $region19: #{tpu_custom_call.1} parent=1 // pred_check_branch
      %23 = sbr.rel (0) target = $region21
    $region20: #{tpu_custom_call.1} parent=1 // pred_region
      _
    $region21: #{tpu_custom_call.1} parent=1 // pred_fallthru
      _
    // Predicated region
    $region22: #{tpu_custom_call.1} parent=1 // pred_check
      _
    $region23: #{tpu_custom_call.1} parent=1 // pred_check_branch
      %25 = sbr.rel (0) target = $region25
    $region24: #{tpu_custom_call.1} parent=1 // pred_region
      _
    $region25: #{tpu_custom_call.1} parent=1 // pred_fallthru
      _
    // Predicated region
    $region26: #{tpu_custom_call.1} parent=1 // pred_check
      _
    $region27: #{tpu_custom_call.1} parent=1 // pred_check_branch
      %27 = sbr.rel (0) target = $region29
    $region28: #{tpu_custom_call.1} parent=1 // pred_region
      _
    $region29: #{tpu_custom_call.1} parent=1 // pred_fallthru
      _
    // Predicated region
    $region30: #{tpu_custom_call.1} parent=1 // pred_check
      _
    $region31: #{tpu_custom_call.1} parent=1 // pred_check_branch
      %29 = sbr.rel (0) target = $region33
    $region32: #{tpu_custom_call.1} parent=1 // pred_region
      _
    $region33: #{tpu_custom_call.1} parent=1 // pred_fallthru
      _
    %v30 = vld [vmem:[%s0] sm:$0xff]
    %v31 = vld [vmem:[%s0 + $0x8] sm:$0xff]
    %v32 = vld [vmem:[%s0 + $0x10] sm:$0xff]
    %v33 = vld [vmem:[%s0 + $0x18] sm:$0xff]
    %v34 = vld [vmem:[%s0 + $0x20] sm:$0xff]
    %v35 = vld [vmem:[%s0 + $0x28] sm:$0xff]
    %v36 = vld [vmem:[%s0 + $0x30] sm:$0xff]
    %v37 = vld [vmem:[%s0 + $0x38] sm:$0xff]
    %v38 = vld [vmem:[%s1] sm:$0xff]
    %v39 = vld [vmem:[%s1 + $0x8] sm:$0xff]
    %v40 = vld [vmem:[%s1 + $0x10] sm:$0xff]
    %v41 = vld [vmem:[%s1 + $0x18] sm:$0xff]
    %v42 = vld [vmem:[%s2] sm:$0x1]
    %v44 = vperm.slane %v42, 0
    %vm46 = vcmask 261120
    %v48 = vsel %vm46, %v30, 0
    %v51 = vsel %vm46, %v31, 0
    %v54 = vsel %vm46, %v32, 0
    %v57 = vsel %vm46, %v33, 0
    %v60 = vsel %vm46, %v34, 0
    %v63 = vsel %vm46, %v35, 0
    %v66 = vsel %vm46, %v36, 0
    %v69 = vsel %vm46, %v37, 0
    %71 = vmatpush.msra.mxu0 0.0
    %72 = vmatpush.msra.mxu0 0.0
    %73 = vmatpush.msra.mxu0 0.0
    %74 = vmatpush.msra.mxu0 0.0
    %75 = vmatpush.msra.mxu0 0.0
    %76 = vmatpush.msra.mxu0 0.0
    %77 = vmatpush.msra.mxu0 0.0
    %78 = vmatpush.msra.mxu0 0.0
    %79 = vmatpush.msra.mxu0 0.0
    %80 = vmatpush.msra.mxu0 0.0
    %81 = vmatpush.msra.mxu0 0.0
    %82 = vmatpush.msra.mxu0 0.0
    %83 = vmatpush.msra.mxu0 %v41
    %84 = vmatpush.msra.mxu0 %v40
    %85 = vmatpush.msra.mxu0 %v39
    %86 = vmatpush.msra.mxu0 %v38
    %87 = vmatmul.f32.gmra.mxu0 %v48
    %v88 = vpop.f32.mrf.mxu0
    %v89 = vadd.f32 %v44, %v88
    %90 = vmatmul.f32.gmra.mxu0 %v51
    %v91 = vpop.f32.mrf.mxu0
    %v92 = vadd.f32 %v44, %v91
    %93 = vmatmul.f32.gmra.mxu0 %v54
    %v94 = vpop.f32.mrf.mxu0
    %v95 = vadd.f32 %v44, %v94
    %96 = vmatmul.f32.gmra.mxu0 %v57
    %v97 = vpop.f32.mrf.mxu0
    %v98 = vadd.f32 %v44, %v97
    %99 = vmatmul.f32.gmra.mxu0 %v60
    %v100 = vpop.f32.mrf.mxu0
    %v101 = vadd.f32 %v44, %v100
    %102 = vmatmul.f32.gmra.mxu0 %v63
    %v103 = vpop.f32.mrf.mxu0
    %v104 = vadd.f32 %v44, %v103
    %105 = vmatmul.f32.gmra.mxu0 %v66
    %v106 = vpop.f32.mrf.mxu0
    %v107 = vadd.f32 %v44, %v106
    %108 = vmatmul.f32.gmra.mxu0 %v69
    %v109 = vpop.f32.mrf.mxu0
    %v110 = vadd.f32 %v44, %v109
    %111 = vdwg.mxu0
    %112 = vst.msk [vmem:[#allocation2] sm:$0xff] %vm46, %v89
    %113 = vst.msk [vmem:[#allocation2 + $0x8] sm:$0xff] %vm46, %v92
    %114 = vst.msk [vmem:[#allocation2 + $0x10] sm:$0xff] %vm46, %v95
    %115 = vst.msk [vmem:[#allocation2 + $0x18] sm:$0xff] %vm46, %v98
    %116 = vst.msk [vmem:[#allocation2 + $0x20] sm:$0xff] %vm46, %v101
    %117 = vst.msk [vmem:[#allocation2 + $0x28] sm:$0xff] %vm46, %v104
    %118 = vst.msk [vmem:[#allocation2 + $0x30] sm:$0xff] %vm46, %v107
    %119 = vst.msk [vmem:[#allocation2 + $0x38] sm:$0xff] %vm46, %v110
    %v120 = vld [vmem:[%s3] sm:$0xff]
    %v121 = vld [vmem:[%s3 + $0x8] sm:$0xff]
    %v122 = vld [vmem:[%s4] sm:$0xff]
    %v123 = vld [vmem:[%s4 + $0x8] sm:$0xff]
    %v124 = vld [vmem:[#allocation2] sm:$0xff]
    %vm125 = vcmask 130048
    %v127 = vsel %vm125, 0.0, 0
    %129 = vmatpush.msra.mxu0 0.0
    %130 = vmatpush.msra.mxu0 0.0
    %131 = vmatpush.msra.mxu0 0.0
    %132 = vmatpush.msra.mxu0 0.0
    %133 = vmatpush.msra.mxu0 0.0
    %134 = vmatpush.msra.mxu0 0.0
    %135 = vmatpush.msra.mxu0 0.0
    %136 = vmatpush.msra.mxu0 0.0
    %137 = vmatpush.msra.mxu0 0.0
    %138 = vmatpush.msra.mxu0 0.0
    %139 = vmatpush.msra.mxu0 0.0
    %140 = vmatpush.msra.mxu0 0.0
    %141 = vmatpush.msra.mxu0 0.0
    %142 = vmatpush.msra.mxu0 0.0
    %143 = vmatpush.msra.mxu0 %v121
    %144 = vmatpush.msra.mxu0 %v120
    %145 = vmatmul.f32.gmra.mxu0 %v127
    %v146 = vpop.f32.mrf.mxu0
    %v147 = vadd.f32 0.0, %v146
    %148 = vdwg.mxu0
    %v149 = vadd.f32 %v124, %v147
    %v150 = vtanh.pop %v149
    %151 = vst.msk [vmem:[#allocation3] sm:$0xff] %vm125, %v150
    %s152 = scalar_lea.vmem [#allocation2], 8
    %v153 = vld [vmem:[%s152] sm:$0xff]
    %v155 = vsel %vm125, %v150, 0
    %157 = vmatpush.msra.mxu0 0.0
    %158 = vmatpush.msra.mxu0 0.0
    %159 = vmatpush.msra.mxu0 0.0
    %160 = vmatpush.msra.mxu0 0.0
    %161 = vmatpush.msra.mxu0 0.0
    %162 = vmatpush.msra.mxu0 0.0
    %163 = vmatpush.msra.mxu0 0.0
    %164 = vmatpush.msra.mxu0 0.0
    %165 = vmatpush.msra.mxu0 0.0
    %166 = vmatpush.msra.mxu0 0.0
    %167 = vmatpush.msra.mxu0 0.0
    %168 = vmatpush.msra.mxu0 0.0
    %169 = vmatpush.msra.mxu0 0.0
    %170 = vmatpush.msra.mxu0 0.0
    %171 = vmatpush.msra.mxu0 %v121
    %172 = vmatpush.msra.mxu0 %v120
    %173 = vmatmul.f32.gmra.mxu0 %v155
    %v174 = vpop.f32.mrf.mxu0
    %v175 = vadd.f32 0.0, %v174
    %176 = vdwg.mxu0
    %v177 = vadd.f32 %v153, %v175
    %v178 = vtanh.pop %v177
    %s179 = scalar_lea.vmem [#allocation3], 8
    %180 = vst.msk [vmem:[%s179] sm:$0xff] %vm125, %v178
    %s181 = scalar_lea.vmem [#allocation2], 16
    %v182 = vld [vmem:[%s181] sm:$0xff]
    %v184 = vsel %vm125, %v178, 0
    %186 = vmatpush.msra.mxu0 0.0
    %187 = vmatpush.msra.mxu0 0.0
    %188 = vmatpush.msra.mxu0 0.0
    %189 = vmatpush.msra.mxu0 0.0
    %190 = vmatpush.msra.mxu0 0.0
    %191 = vmatpush.msra.mxu0 0.0
    %192 = vmatpush.msra.mxu0 0.0
    %193 = vmatpush.msra.mxu0 0.0
    %194 = vmatpush.msra.mxu0 0.0
    %195 = vmatpush.msra.mxu0 0.0
    %196 = vmatpush.msra.mxu0 0.0
    %197 = vmatpush.msra.mxu0 0.0
    %198 = vmatpush.msra.mxu0 0.0
    %199 = vmatpush.msra.mxu0 0.0
    %200 = vmatpush.msra.mxu0 %v121
    %201 = vmatpush.msra.mxu0 %v120
    %202 = vmatmul.f32.gmra.mxu0 %v184
    %v203 = vpop.f32.mrf.mxu0
    %v204 = vadd.f32 0.0, %v203
    %205 = vdwg.mxu0
    %v206 = vadd.f32 %v182, %v204
    %v207 = vtanh.pop %v206
    %s208 = scalar_lea.vmem [#allocation3], 16
    %209 = vst.msk [vmem:[%s208] sm:$0xff] %vm125, %v207
    %s210 = scalar_lea.vmem [#allocation2], 24
    %v211 = vld [vmem:[%s210] sm:$0xff]
    %v213 = vsel %vm125, %v207, 0
    %215 = vmatpush.msra.mxu0 0.0
    %216 = vmatpush.msra.mxu0 0.0
    %217 = vmatpush.msra.mxu0 0.0
    %218 = vmatpush.msra.mxu0 0.0
    %219 = vmatpush.msra.mxu0 0.0
    %220 = vmatpush.msra.mxu0 0.0
    %221 = vmatpush.msra.mxu0 0.0
    %222 = vmatpush.msra.mxu0 0.0
    %223 = vmatpush.msra.mxu0 0.0
    %224 = vmatpush.msra.mxu0 0.0
    %225 = vmatpush.msra.mxu0 0.0
    %226 = vmatpush.msra.mxu0 0.0
    %227 = vmatpush.msra.mxu0 0.0
    %228 = vmatpush.msra.mxu0 0.0
    %229 = vmatpush.msra.mxu0 %v121
    %230 = vmatpush.msra.mxu0 %v120
    %231 = vmatmul.f32.gmra.mxu0 %v213
    %v232 = vpop.f32.mrf.mxu0
    %v233 = vadd.f32 0.0, %v232
    %234 = vdwg.mxu0
    %v235 = vadd.f32 %v211, %v233
    %v236 = vtanh.pop %v235
    %s237 = scalar_lea.vmem [#allocation3], 24
    %238 = vst.msk [vmem:[%s237] sm:$0xff] %vm125, %v236
    %s239 = scalar_lea.vmem [#allocation2], 32
    %v240 = vld [vmem:[%s239] sm:$0xff]
    %v242 = vsel %vm125, %v236, 0
    %244 = vmatpush.msra.mxu0 0.0
    %245 = vmatpush.msra.mxu0 0.0
    %246 = vmatpush.msra.mxu0 0.0
    %247 = vmatpush.msra.mxu0 0.0
    %248 = vmatpush.msra.mxu0 0.0
    %249 = vmatpush.msra.mxu0 0.0
    %250 = vmatpush.msra.mxu0 0.0
    %251 = vmatpush.msra.mxu0 0.0
    %252 = vmatpush.msra.mxu0 0.0
    %253 = vmatpush.msra.mxu0 0.0
    %254 = vmatpush.msra.mxu0 0.0
    %255 = vmatpush.msra.mxu0 0.0
    %256 = vmatpush.msra.mxu0 0.0
    %257 = vmatpush.msra.mxu0 0.0
    %258 = vmatpush.msra.mxu0 %v121
    %259 = vmatpush.msra.mxu0 %v120
    %260 = vmatmul.f32.gmra.mxu0 %v242
    %v261 = vpop.f32.mrf.mxu0
    %v262 = vadd.f32 0.0, %v261
    %263 = vdwg.mxu0
    %v264 = vadd.f32 %v240, %v262
    %v265 = vtanh.pop %v264
    %s266 = scalar_lea.vmem [#allocation3], 32
    %267 = vst.msk [vmem:[%s266] sm:$0xff] %vm125, %v265
    %s268 = scalar_lea.vmem [#allocation2], 40
    %v269 = vld [vmem:[%s268] sm:$0xff]
    %v271 = vsel %vm125, %v265, 0
    %273 = vmatpush.msra.mxu0 0.0
    %274 = vmatpush.msra.mxu0 0.0
    %275 = vmatpush.msra.mxu0 0.0
    %276 = vmatpush.msra.mxu0 0.0
    %277 = vmatpush.msra.mxu0 0.0
    %278 = vmatpush.msra.mxu0 0.0
    %279 = vmatpush.msra.mxu0 0.0
    %280 = vmatpush.msra.mxu0 0.0
    %281 = vmatpush.msra.mxu0 0.0
    %282 = vmatpush.msra.mxu0 0.0
    %283 = vmatpush.msra.mxu0 0.0
    %284 = vmatpush.msra.mxu0 0.0
    %285 = vmatpush.msra.mxu0 0.0
    %286 = vmatpush.msra.mxu0 0.0
    %287 = vmatpush.msra.mxu0 %v121
    %288 = vmatpush.msra.mxu0 %v120
    %289 = vmatmul.f32.gmra.mxu0 %v271
    %v290 = vpop.f32.mrf.mxu0
    %v291 = vadd.f32 0.0, %v290
    %292 = vdwg.mxu0
    %v293 = vadd.f32 %v269, %v291
    %v294 = vtanh.pop %v293
    %s295 = scalar_lea.vmem [#allocation3], 40
    %296 = vst.msk [vmem:[%s295] sm:$0xff] %vm125, %v294
    %s297 = scalar_lea.vmem [#allocation2], 48
    %v298 = vld [vmem:[%s297] sm:$0xff]
    %v300 = vsel %vm125, %v294, 0
    %302 = vmatpush.msra.mxu0 0.0
    %303 = vmatpush.msra.mxu0 0.0
    %304 = vmatpush.msra.mxu0 0.0
    %305 = vmatpush.msra.mxu0 0.0
    %306 = vmatpush.msra.mxu0 0.0
    %307 = vmatpush.msra.mxu0 0.0
    %308 = vmatpush.msra.mxu0 0.0
    %309 = vmatpush.msra.mxu0 0.0
    %310 = vmatpush.msra.mxu0 0.0
    %311 = vmatpush.msra.mxu0 0.0
    %312 = vmatpush.msra.mxu0 0.0
    %313 = vmatpush.msra.mxu0 0.0
    %314 = vmatpush.msra.mxu0 0.0
    %315 = vmatpush.msra.mxu0 0.0
    %316 = vmatpush.msra.mxu0 %v121
    %317 = vmatpush.msra.mxu0 %v120
    %318 = vmatmul.f32.gmra.mxu0 %v300
    %v319 = vpop.f32.mrf.mxu0
    %v320 = vadd.f32 0.0, %v319
    %321 = vdwg.mxu0
    %v322 = vadd.f32 %v298, %v320
    %v323 = vtanh.pop %v322
    %s324 = scalar_lea.vmem [#allocation3], 48
    %325 = vst.msk [vmem:[%s324] sm:$0xff] %vm125, %v323
    %s326 = scalar_lea.vmem [#allocation2], 56
    %v327 = vld [vmem:[%s326] sm:$0xff]
    %v329 = vsel %vm125, %v323, 0
    %331 = vmatpush.msra.mxu0 0.0
    %332 = vmatpush.msra.mxu0 0.0
    %333 = vmatpush.msra.mxu0 0.0
    %334 = vmatpush.msra.mxu0 0.0
    %335 = vmatpush.msra.mxu0 0.0
    %336 = vmatpush.msra.mxu0 0.0
    %337 = vmatpush.msra.mxu0 0.0
    %338 = vmatpush.msra.mxu0 0.0
    %339 = vmatpush.msra.mxu0 0.0
    %340 = vmatpush.msra.mxu0 0.0
    %341 = vmatpush.msra.mxu0 0.0
    %342 = vmatpush.msra.mxu0 0.0
    %343 = vmatpush.msra.mxu0 0.0
    %344 = vmatpush.msra.mxu0 0.0
    %345 = vmatpush.msra.mxu0 %v121
    %346 = vmatpush.msra.mxu0 %v120
    %347 = vmatmul.f32.gmra.mxu0 %v329
    %v348 = vpop.f32.mrf.mxu0
    %v349 = vadd.f32 0.0, %v348
    %350 = vdwg.mxu0
    %v351 = vadd.f32 %v327, %v349
    %v352 = vtanh.pop %v351
    %s353 = scalar_lea.vmem [#allocation3], 56
    %354 = vst.msk [vmem:[%s353] sm:$0xff] %vm125, %v352
    %v355 = vld [vmem:[%s326] sm:$0xff]
    %356 = vmatpush.msra.mxu0 0.0
    %357 = vmatpush.msra.mxu0 0.0
    %358 = vmatpush.msra.mxu0 0.0
    %359 = vmatpush.msra.mxu0 0.0
    %360 = vmatpush.msra.mxu0 0.0
    %361 = vmatpush.msra.mxu0 0.0
    %362 = vmatpush.msra.mxu0 0.0
    %363 = vmatpush.msra.mxu0 0.0
    %364 = vmatpush.msra.mxu0 0.0
    %365 = vmatpush.msra.mxu0 0.0
    %366 = vmatpush.msra.mxu0 0.0
    %367 = vmatpush.msra.mxu0 0.0
    %368 = vmatpush.msra.mxu0 0.0
    %369 = vmatpush.msra.mxu0 0.0
    %370 = vmatpush.msra.mxu0 %v123
    %371 = vmatpush.msra.mxu0 %v122
    %372 = vmatmul.f32.gmra.mxu0 %v127
    %v373 = vpop.f32.mrf.mxu0
    %v374 = vadd.f32 0.0, %v373
    %375 = vdwg.mxu0
    %377 = vrot.lane.b32.xlu0 %v374, 16
    %v378 = vpop.permute.xlu0 %377
    %v380 = vadd.f32 %v355, %v378
    %v381 = vtanh.pop %v380
    %383 = vrot.lane.b32.xlu0 %v381, 112
    %v384 = vpop.permute.xlu0 %383
    %s386 = scalar_lea.vmem [#allocation4], 56
    %387 = vst.msk [vmem:[%s386] sm:$0xff] %vm125, %v384
    %v388 = vld [vmem:[%s297] sm:$0xff]
    %v389 = vsel %vm125, %v384, 0
    %391 = vmatpush.msra.mxu0 0.0
    %392 = vmatpush.msra.mxu0 0.0
    %393 = vmatpush.msra.mxu0 0.0
    %394 = vmatpush.msra.mxu0 0.0
    %395 = vmatpush.msra.mxu0 0.0
    %396 = vmatpush.msra.mxu0 0.0
    %397 = vmatpush.msra.mxu0 0.0
    %398 = vmatpush.msra.mxu0 0.0
    %399 = vmatpush.msra.mxu0 0.0
    %400 = vmatpush.msra.mxu0 0.0
    %401 = vmatpush.msra.mxu0 0.0
    %402 = vmatpush.msra.mxu0 0.0
    %403 = vmatpush.msra.mxu0 0.0
    %404 = vmatpush.msra.mxu0 0.0
    %405 = vmatpush.msra.mxu0 %v123
    %406 = vmatpush.msra.mxu0 %v122
    %407 = vmatmul.f32.gmra.mxu0 %v389
    %v408 = vpop.f32.mrf.mxu0
    %v409 = vadd.f32 0.0, %v408
    %410 = vdwg.mxu0
    %412 = vrot.lane.b32.xlu0 %v409, 16
    %v413 = vpop.permute.xlu0 %412
    %v415 = vadd.f32 %v388, %v413
    %v416 = vtanh.pop %v415
    %418 = vrot.lane.b32.xlu0 %v416, 112
    %v419 = vpop.permute.xlu0 %418
    %s421 = scalar_lea.vmem [#allocation4], 48
    %422 = vst.msk [vmem:[%s421] sm:$0xff] %vm125, %v419
    %v423 = vld [vmem:[%s268] sm:$0xff]
    %v424 = vsel %vm125, %v419, 0
    %426 = vmatpush.msra.mxu0 0.0
    %427 = vmatpush.msra.mxu0 0.0
    %428 = vmatpush.msra.mxu0 0.0
    %429 = vmatpush.msra.mxu0 0.0
    %430 = vmatpush.msra.mxu0 0.0
    %431 = vmatpush.msra.mxu0 0.0
    %432 = vmatpush.msra.mxu0 0.0
    %433 = vmatpush.msra.mxu0 0.0
    %434 = vmatpush.msra.mxu0 0.0
    %435 = vmatpush.msra.mxu0 0.0
    %436 = vmatpush.msra.mxu0 0.0
    %437 = vmatpush.msra.mxu0 0.0
    %438 = vmatpush.msra.mxu0 0.0
    %439 = vmatpush.msra.mxu0 0.0
    %440 = vmatpush.msra.mxu0 %v123
    %441 = vmatpush.msra.mxu0 %v122
    %442 = vmatmul.f32.gmra.mxu0 %v424
    %v443 = vpop.f32.mrf.mxu0
    %v444 = vadd.f32 0.0, %v443
    %445 = vdwg.mxu0
    %447 = vrot.lane.b32.xlu0 %v444, 16
    %v448 = vpop.permute.xlu0 %447
    %v450 = vadd.f32 %v423, %v448
    %v451 = vtanh.pop %v450
    %453 = vrot.lane.b32.xlu0 %v451, 112
    %v454 = vpop.permute.xlu0 %453
    %s456 = scalar_lea.vmem [#allocation4], 40
    %457 = vst.msk [vmem:[%s456] sm:$0xff] %vm125, %v454
    %v458 = vld [vmem:[%s239] sm:$0xff]
    %v459 = vsel %vm125, %v454, 0
    %461 = vmatpush.msra.mxu0 0.0
    %462 = vmatpush.msra.mxu0 0.0
    %463 = vmatpush.msra.mxu0 0.0
    %464 = vmatpush.msra.mxu0 0.0
    %465 = vmatpush.msra.mxu0 0.0
    %466 = vmatpush.msra.mxu0 0.0
    %467 = vmatpush.msra.mxu0 0.0
    %468 = vmatpush.msra.mxu0 0.0
    %469 = vmatpush.msra.mxu0 0.0
    %470 = vmatpush.msra.mxu0 0.0
    %471 = vmatpush.msra.mxu0 0.0
    %472 = vmatpush.msra.mxu0 0.0
    %473 = vmatpush.msra.mxu0 0.0
    %474 = vmatpush.msra.mxu0 0.0
    %475 = vmatpush.msra.mxu0 %v123
    %476 = vmatpush.msra.mxu0 %v122
    %477 = vmatmul.f32.gmra.mxu0 %v459
    %v478 = vpop.f32.mrf.mxu0
    %v479 = vadd.f32 0.0, %v478
    %480 = vdwg.mxu0
    %482 = vrot.lane.b32.xlu0 %v479, 16
    %v483 = vpop.permute.xlu0 %482
    %v485 = vadd.f32 %v458, %v483
    %v486 = vtanh.pop %v485
    %488 = vrot.lane.b32.xlu0 %v486, 112
    %v489 = vpop.permute.xlu0 %488
    %s491 = scalar_lea.vmem [#allocation4], 32
    %492 = vst.msk [vmem:[%s491] sm:$0xff] %vm125, %v489
    %v493 = vld [vmem:[%s210] sm:$0xff]
    %v494 = vsel %vm125, %v489, 0
    %496 = vmatpush.msra.mxu0 0.0
    %497 = vmatpush.msra.mxu0 0.0
    %498 = vmatpush.msra.mxu0 0.0
    %499 = vmatpush.msra.mxu0 0.0
    %500 = vmatpush.msra.mxu0 0.0
    %501 = vmatpush.msra.mxu0 0.0
    %502 = vmatpush.msra.mxu0 0.0
    %503 = vmatpush.msra.mxu0 0.0
    %504 = vmatpush.msra.mxu0 0.0
    %505 = vmatpush.msra.mxu0 0.0
    %506 = vmatpush.msra.mxu0 0.0
    %507 = vmatpush.msra.mxu0 0.0
    %508 = vmatpush.msra.mxu0 0.0
    %509 = vmatpush.msra.mxu0 0.0
    %510 = vmatpush.msra.mxu0 %v123
    %511 = vmatpush.msra.mxu0 %v122
    %512 = vmatmul.f32.gmra.mxu0 %v494
    %v513 = vpop.f32.mrf.mxu0
    %v514 = vadd.f32 0.0, %v513
    %515 = vdwg.mxu0
    %517 = vrot.lane.b32.xlu0 %v514, 16
    %v518 = vpop.permute.xlu0 %517
    %v520 = vadd.f32 %v493, %v518
    %v521 = vtanh.pop %v520
    %523 = vrot.lane.b32.xlu0 %v521, 112
    %v524 = vpop.permute.xlu0 %523
    %s526 = scalar_lea.vmem [#allocation4], 24
    %527 = vst.msk [vmem:[%s526] sm:$0xff] %vm125, %v524
    %v528 = vld [vmem:[%s181] sm:$0xff]
    %v529 = vsel %vm125, %v524, 0
    %531 = vmatpush.msra.mxu0 0.0
    %532 = vmatpush.msra.mxu0 0.0
    %533 = vmatpush.msra.mxu0 0.0
    %534 = vmatpush.msra.mxu0 0.0
    %535 = vmatpush.msra.mxu0 0.0
    %536 = vmatpush.msra.mxu0 0.0
    %537 = vmatpush.msra.mxu0 0.0
    %538 = vmatpush.msra.mxu0 0.0
    %539 = vmatpush.msra.mxu0 0.0
    %540 = vmatpush.msra.mxu0 0.0
    %541 = vmatpush.msra.mxu0 0.0
    %542 = vmatpush.msra.mxu0 0.0
    %543 = vmatpush.msra.mxu0 0.0
    %544 = vmatpush.msra.mxu0 0.0
    %545 = vmatpush.msra.mxu0 %v123
    %546 = vmatpush.msra.mxu0 %v122
    %547 = vmatmul.f32.gmra.mxu0 %v529
    %v548 = vpop.f32.mrf.mxu0
    %v549 = vadd.f32 0.0, %v548
    %550 = vdwg.mxu0
    %552 = vrot.lane.b32.xlu0 %v549, 16
    %v553 = vpop.permute.xlu0 %552
    %v555 = vadd.f32 %v528, %v553
    %v556 = vtanh.pop %v555
    %558 = vrot.lane.b32.xlu0 %v556, 112
    %v559 = vpop.permute.xlu0 %558
    %s561 = scalar_lea.vmem [#allocation4], 16
    %562 = vst.msk [vmem:[%s561] sm:$0xff] %vm125, %v559
    %v563 = vld [vmem:[%s152] sm:$0xff]
    %v564 = vsel %vm125, %v559, 0
    %566 = vmatpush.msra.mxu0 0.0
    %567 = vmatpush.msra.mxu0 0.0
    %568 = vmatpush.msra.mxu0 0.0
    %569 = vmatpush.msra.mxu0 0.0
    %570 = vmatpush.msra.mxu0 0.0
    %571 = vmatpush.msra.mxu0 0.0
    %572 = vmatpush.msra.mxu0 0.0
    %573 = vmatpush.msra.mxu0 0.0
    %574 = vmatpush.msra.mxu0 0.0
    %575 = vmatpush.msra.mxu0 0.0
    %576 = vmatpush.msra.mxu0 0.0
    %577 = vmatpush.msra.mxu0 0.0
    %578 = vmatpush.msra.mxu0 0.0
    %579 = vmatpush.msra.mxu0 0.0
    %580 = vmatpush.msra.mxu0 %v123
    %581 = vmatpush.msra.mxu0 %v122
    %582 = vmatmul.f32.gmra.mxu0 %v564
    %v583 = vpop.f32.mrf.mxu0
    %v584 = vadd.f32 0.0, %v583
    %585 = vdwg.mxu0
    %587 = vrot.lane.b32.xlu0 %v584, 16
    %v588 = vpop.permute.xlu0 %587
    %v590 = vadd.f32 %v563, %v588
    %v591 = vtanh.pop %v590
    %593 = vrot.lane.b32.xlu0 %v591, 112
    %v594 = vpop.permute.xlu0 %593
    %s596 = scalar_lea.vmem [#allocation4], 8
    %597 = vst.msk [vmem:[%s596] sm:$0xff] %vm125, %v594
    %v598 = vld [vmem:[#allocation2] sm:$0xff]
    %v599 = vsel %vm125, %v594, 0
    %601 = vmatpush.msra.mxu0 0.0
    %602 = vmatpush.msra.mxu0 0.0
    %603 = vmatpush.msra.mxu0 0.0
    %604 = vmatpush.msra.mxu0 0.0
    %605 = vmatpush.msra.mxu0 0.0
    %606 = vmatpush.msra.mxu0 0.0
    %607 = vmatpush.msra.mxu0 0.0
    %608 = vmatpush.msra.mxu0 0.0
    %609 = vmatpush.msra.mxu0 0.0
    %610 = vmatpush.msra.mxu0 0.0
    %611 = vmatpush.msra.mxu0 0.0
    %612 = vmatpush.msra.mxu0 0.0
    %613 = vmatpush.msra.mxu0 0.0
    %614 = vmatpush.msra.mxu0 0.0
    %615 = vmatpush.msra.mxu0 %v123
    %616 = vmatpush.msra.mxu0 %v122
    %617 = vmatmul.f32.gmra.mxu0 %v599
    %v618 = vpop.f32.mrf.mxu0
    %v619 = vadd.f32 0.0, %v618
    %620 = vdwg.mxu0
    %622 = vrot.lane.b32.xlu0 %v619, 16
    %v623 = vpop.permute.xlu0 %622
    %v625 = vadd.f32 %v598, %v623
    %v626 = vtanh.pop %v625
    %628 = vrot.lane.b32.xlu0 %v626, 112
    %v629 = vpop.permute.xlu0 %628
    %631 = vst.msk [vmem:[#allocation4] sm:$0xff] %vm125, %v629
    %v632 = vld [vmem:[#allocation3] sm:$0xff]
    %v633 = vld [vmem:[#allocation3 + $0x8] sm:$0xff]
    %v634 = vld [vmem:[#allocation3 + $0x10] sm:$0xff]
    %v635 = vld [vmem:[#allocation3 + $0x18] sm:$0xff]
    %v636 = vld [vmem:[#allocation3 + $0x20] sm:$0xff]
    %v637 = vld [vmem:[#allocation3 + $0x28] sm:$0xff]
    %v638 = vld [vmem:[#allocation3 + $0x30] sm:$0xff]
    %v639 = vld [vmem:[#allocation3 + $0x38] sm:$0xff]
    %v640 = vld [vmem:[#allocation4] sm:$0xff]
    %v641 = vld [vmem:[#allocation4 + $0x8] sm:$0xff]
    %v642 = vld [vmem:[#allocation4 + $0x10] sm:$0xff]
    %v643 = vld [vmem:[#allocation4 + $0x18] sm:$0xff]
    %v644 = vld [vmem:[#allocation4 + $0x20] sm:$0xff]
    %v645 = vld [vmem:[#allocation4 + $0x28] sm:$0xff]
    %v646 = vld [vmem:[#allocation4 + $0x30] sm:$0xff]
    %v647 = vld [vmem:[#allocation4 + $0x38] sm:$0xff]
    %v648 = vld [vmem:[%s5] sm:$0xff]
    %v649 = vld [vmem:[%s5 + $0x8] sm:$0xff]
    %v650 = vld [vmem:[%s5 + $0x10] sm:$0xff]
    %v651 = vld [vmem:[%s5 + $0x18] sm:$0xff]
    %v653 = vsel %vm125, %v640, 0
    %v656 = vsel %vm125, %v641, 0
    %v659 = vsel %vm125, %v642, 0
    %v662 = vsel %vm125, %v643, 0
    %v665 = vsel %vm125, %v644, 0
    %v668 = vsel %vm125, %v645, 0
    %v671 = vsel %vm125, %v646, 0
    %v674 = vsel %vm125, %v647, 0
    %676 = vmatpush.msra.mxu0 0.0
    %677 = vmatpush.msra.mxu0 0.0
    %678 = vmatpush.msra.mxu0 0.0
    %679 = vmatpush.msra.mxu0 0.0
    %680 = vmatpush.msra.mxu0 0.0
    %681 = vmatpush.msra.mxu0 0.0
    %682 = vmatpush.msra.mxu0 0.0
    %683 = vmatpush.msra.mxu0 0.0
    %684 = vmatpush.msra.mxu0 0.0
    %685 = vmatpush.msra.mxu0 0.0
    %686 = vmatpush.msra.mxu0 0.0
    %687 = vmatpush.msra.mxu0 0.0
    %688 = vmatpush.msra.mxu0 0.0
    %689 = vmatpush.msra.mxu0 0.0
    %690 = vmatpush.msra.mxu0 %v651
    %691 = vmatpush.msra.mxu0 %v650
    %692 = vmatmul.f32.gmra.mxu0 %v653
    %v693 = vpop.f32.mrf.mxu0
    %v694 = vadd.f32 0.0, %v693
    %695 = vmatmul.f32.gmra.mxu0 %v656
    %v696 = vpop.f32.mrf.mxu0
    %v697 = vadd.f32 0.0, %v696
    %698 = vmatmul.f32.gmra.mxu0 %v659
    %v699 = vpop.f32.mrf.mxu0
    %v700 = vadd.f32 0.0, %v699
    %701 = vmatmul.f32.gmra.mxu0 %v662
    %v702 = vpop.f32.mrf.mxu0
    %v703 = vadd.f32 0.0, %v702
    %704 = vmatmul.f32.gmra.mxu0 %v665
    %v705 = vpop.f32.mrf.mxu0
    %v706 = vadd.f32 0.0, %v705
    %707 = vmatmul.f32.gmra.mxu0 %v668
    %v708 = vpop.f32.mrf.mxu0
    %v709 = vadd.f32 0.0, %v708
    %710 = vmatmul.f32.gmra.mxu0 %v671
    %v711 = vpop.f32.mrf.mxu0
    %v712 = vadd.f32 0.0, %v711
    %713 = vmatmul.f32.gmra.mxu0 %v674
    %v714 = vpop.f32.mrf.mxu0
    %v715 = vadd.f32 0.0, %v714
    %716 = vdwg.mxu0
    %v718 = vsel %vm125, %v632, 0
    %v721 = vsel %vm125, %v633, 0
    %v724 = vsel %vm125, %v634, 0
    %v727 = vsel %vm125, %v635, 0
    %v730 = vsel %vm125, %v636, 0
    %v733 = vsel %vm125, %v637, 0
    %v736 = vsel %vm125, %v638, 0
    %v739 = vsel %vm125, %v639, 0
    %741 = vmatpush.msra.mxu0 0.0
    %742 = vmatpush.msra.mxu0 0.0
    %743 = vmatpush.msra.mxu0 0.0
    %744 = vmatpush.msra.mxu0 0.0
    %745 = vmatpush.msra.mxu0 0.0
    %746 = vmatpush.msra.mxu0 0.0
    %747 = vmatpush.msra.mxu0 0.0
    %748 = vmatpush.msra.mxu0 0.0
    %749 = vmatpush.msra.mxu0 0.0
    %750 = vmatpush.msra.mxu0 0.0
    %751 = vmatpush.msra.mxu0 0.0
    %752 = vmatpush.msra.mxu0 0.0
    %753 = vmatpush.msra.mxu0 0.0
    %754 = vmatpush.msra.mxu0 0.0
    %755 = vmatpush.msra.mxu0 %v649
    %756 = vmatpush.msra.mxu0 %v648
    %757 = vmatmul.f32.gmra.mxu0 %v718
    %v758 = vpop.f32.mrf.mxu0
    %v759 = vadd.f32 %v694, %v758
    %760 = vmatmul.f32.gmra.mxu0 %v721
    %v761 = vpop.f32.mrf.mxu0
    %v762 = vadd.f32 %v697, %v761
    %763 = vmatmul.f32.gmra.mxu0 %v724
    %v764 = vpop.f32.mrf.mxu0
    %v765 = vadd.f32 %v700, %v764
    %766 = vmatmul.f32.gmra.mxu0 %v727
    %v767 = vpop.f32.mrf.mxu0
    %v768 = vadd.f32 %v703, %v767
    %769 = vmatmul.f32.gmra.mxu0 %v730
    %v770 = vpop.f32.mrf.mxu0
    %v771 = vadd.f32 %v706, %v770
    %772 = vmatmul.f32.gmra.mxu0 %v733
    %v773 = vpop.f32.mrf.mxu0
    %v774 = vadd.f32 %v709, %v773
    %775 = vmatmul.f32.gmra.mxu0 %v736
    %v776 = vpop.f32.mrf.mxu0
    %v777 = vadd.f32 %v712, %v776
    %778 = vmatmul.f32.gmra.mxu0 %v739
    %v779 = vpop.f32.mrf.mxu0
    %v780 = vadd.f32 %v715, %v779
    %781 = vdwg.mxu0
    %vm782 = vcmask 64512
    %v783 = vsel %vm782, %v759, -inf
    %v784 = vsel %vm782, %v762, -inf
    %v785 = vsel %vm782, %v765, -inf
    %v786 = vsel %vm782, %v768, -inf
    %v787 = vsel %vm782, %v771, -inf
    %v788 = vmax.f32 %v783, %v787
    %v789 = vsel %vm782, %v774, -inf
    %v790 = vmax.f32 %v784, %v789
    %v791 = vsel %vm782, %v777, -inf
    %v792 = vmax.f32 %v785, %v791
    %v793 = vsel %vm782, %v780, -inf
    %v794 = vmax.f32 %v786, %v793
    %v795 = vmax.f32 %v788, %v790
    %v796 = vmax.f32 %v792, %v794
    %v797 = vmax.f32 %v795, %v796
    %v798 = vsub.f32 %v759, %v797
    %v799 = vsub.f32 %v762, %v797
    %v800 = vsub.f32 %v765, %v797
    %v801 = vsub.f32 %v768, %v797
    %v802 = vsub.f32 %v771, %v797
    %v803 = vsub.f32 %v774, %v797
    %v804 = vsub.f32 %v777, %v797
    %v805 = vsub.f32 %v780, %v797
    %v806 = vmul.f32 %v798, 1.442695
    %v807 = vpow.pop %v806
    %v808 = vmul.f32 %v799, 1.442695
    %v809 = vpow.pop %v808
    %v810 = vmul.f32 %v800, 1.442695
    %v811 = vpow.pop %v810
    %v812 = vmul.f32 %v801, 1.442695
    %v813 = vpow.pop %v812
    %v814 = vmul.f32 %v802, 1.442695
    %v815 = vpow.pop %v814
    %v816 = vmul.f32 %v803, 1.442695
    %v817 = vpow.pop %v816
    %v818 = vmul.f32 %v804, 1.442695
    %v819 = vpow.pop %v818
    %v820 = vmul.f32 %v805, 1.442695
    %v821 = vpow.pop %v820
    %v822 = vsel %vm782, %v807, 0.0
    %v823 = vsel %vm782, %v809, 0.0
    %v824 = vadd.f32 %v822, %v823
    %v825 = vsel %vm782, %v811, 0.0
    %v826 = vadd.f32 %v824, %v825
    %v827 = vsel %vm782, %v813, 0.0
    %v828 = vadd.f32 %v826, %v827
    %v829 = vsel %vm782, %v815, 0.0
    %v830 = vadd.f32 %v828, %v829
    %v831 = vsel %vm782, %v817, 0.0
    %v832 = vadd.f32 %v830, %v831
    %v833 = vsel %vm782, %v819, 0.0
    %v834 = vadd.f32 %v832, %v833
    %v835 = vsel %vm782, %v821, 0.0
    %v836 = vadd.f32 %v834, %v835
    %v837 = vrcp.pop %v836
    %v838 = vmul.f32 %v807, %v837
    %v839 = vmul.f32 %v809, %v837
    %v840 = vmul.f32 %v811, %v837
    %v841 = vmul.f32 %v813, %v837
    %v842 = vmul.f32 %v815, %v837
    %v843 = vmul.f32 %v817, %v837
    %v844 = vmul.f32 %v819, %v837
    %v845 = vmul.f32 %v821, %v837
    %v846 = vrot.slane %v633, 7
    %vm847 = vcmask 1041409
    %v848 = vsel %vm847, %v846, %v632
    %v849 = vrot.slane %v634, 6
    %vm850 = vcmask 1042434
    %v851 = vsel %vm850, %v849, %v848
    %v852 = vrot.slane %v635, 5
    %vm853 = vcmask 1043459
    %v854 = vsel %vm853, %v852, %v851
    %v855 = vrot.slane %v636, 4
    %vm856 = vcmask 1044484
    %v857 = vsel %vm856, %v855, %v854
    %v858 = vrot.slane %v637, 3
    %vm859 = vcmask 1045509
    %v860 = vsel %vm859, %v858, %v857
    %v861 = vrot.slane %v638, 2
    %vm862 = vcmask 1046534
    %v863 = vsel %vm862, %v861, %v860
    %v864 = vrot.slane %v639, 1
    %vm865 = vcmask 1047559
    %v866 = vsel %vm865, %v864, %v863
    %v868 = vrot.slane %v641, 7
    %v869 = vsel %vm847, %v868, %v640
    %v870 = vrot.slane %v642, 6
    %v871 = vsel %vm850, %v870, %v869
    %v872 = vrot.slane %v643, 5
    %v873 = vsel %vm853, %v872, %v871
    %v874 = vrot.slane %v644, 4
    %v875 = vsel %vm856, %v874, %v873
    %v876 = vrot.slane %v645, 3
    %v877 = vsel %vm859, %v876, %v875
    %v878 = vrot.slane %v646, 2
    %v879 = vsel %vm862, %v878, %v877
    %v880 = vrot.slane %v647, 1
    %v881 = vsel %vm865, %v880, %v879
    %882 = vrot.lane.b32.xlu0 %v881, 16
    %v883 = vpop.permute.xlu0 %882
    %v885 = vsel %vm125, %v866, %v883
    %v894 = vrot.slane %v839, 7
    %v895 = vsel %vm847, %v894, %v838
    %v896 = vrot.slane %v840, 6
    %v897 = vsel %vm850, %v896, %v895
    %v898 = vrot.slane %v841, 5
    %v899 = vsel %vm853, %v898, %v897
    %v900 = vrot.slane %v842, 4
    %v901 = vsel %vm856, %v900, %v899
    %v902 = vrot.slane %v843, 3
    %v903 = vsel %vm859, %v902, %v901
    %v904 = vrot.slane %v844, 2
    %v905 = vsel %vm862, %v904, %v903
    %v906 = vrot.slane %v845, 1
    %v907 = vsel %vm865, %v906, %v905
    %909 = vxpose.xlu0.b32.start [1/16] %v907, 128
    %910 = vxpose.xlu0.b32.cont [2/16] 0.0, 128
    %911 = vxpose.xlu0.b32.cont [3/16] 0.0, 128
    %912 = vxpose.xlu0.b32.cont [4/16] 0.0, 128
    %913 = vxpose.xlu0.b32.cont [5/16] 0.0, 128
    %914 = vxpose.xlu0.b32.cont [6/16] 0.0, 128
    %915 = vxpose.xlu0.b32.cont [7/16] 0.0, 128
    %916 = vxpose.xlu0.b32.cont [8/16] 0.0, 128
    %917 = vxpose.xlu0.b32.cont [9/16] 0.0, 128
    %918 = vxpose.xlu0.b32.cont [10/16] 0.0, 128
    %919 = vxpose.xlu0.b32.cont [11/16] 0.0, 128
    %920 = vxpose.xlu0.b32.cont [12/16] 0.0, 128
    %921 = vxpose.xlu0.b32.cont [13/16] 0.0, 128
    %922 = vxpose.xlu0.b32.cont [14/16] 0.0, 128
    %923 = vxpose.xlu0.b32.cont [15/16] 0.0, 128
    %924 = vxpose.xlu0.b32.end [16/16] 0.0, 128
    %v925 = vpop.trf.xlu0
    %v926 = vpop.trf.xlu0
    %v927 = vpop.trf.xlu0
    %v928 = vpop.trf.xlu0
    %v929 = vpop.trf.xlu0
    %v930 = vpop.trf.xlu0
    %v931 = vpop.trf.xlu0
    %v932 = vpop.trf.xlu0
    %v933 = vpop.trf.xlu0
    %v934 = vpop.trf.xlu0
    %v935 = vpop.trf.xlu0
    %v936 = vpop.trf.xlu0
    %v937 = vpop.trf.xlu0
    %v938 = vpop.trf.xlu0
    %v939 = vpop.trf.xlu0
    %v940 = vpop.trf.xlu0
    %v942 = vsel %vm782, %v925, 0
    %944 = vmatpush.msra.mxu0 0.0
    %945 = vmatpush.msra.mxu0 0.0
    %946 = vmatpush.msra.mxu0 0.0
    %947 = vmatpush.msra.mxu0 0.0
    %948 = vmatpush.msra.mxu0 0.0
    %949 = vmatpush.msra.mxu0 0.0
    %950 = vmatpush.msra.mxu0 0.0
    %951 = vmatpush.msra.mxu0 0.0
    %952 = vmatpush.msra.mxu0 0.0
    %953 = vmatpush.msra.mxu0 0.0
    %954 = vmatpush.msra.mxu0 0.0
    %955 = vmatpush.msra.mxu0 0.0
    %956 = vmatpush.msra.mxu0 0.0
    %957 = vmatpush.msra.mxu0 0.0
    %958 = vmatpush.msra.mxu0 0.0
    %959 = vmatpush.msra.mxu0 %v885
    %960 = vmatmul.f32.gmra.mxu0 %v942
    %v961 = vpop.f32.mrf.mxu0
    %v962 = vadd.f32 0.0, %v961
    %963 = vdwg.mxu0
    %v964 = vsel %vm850, %v846, %v632
    %v965 = vsel %vm853, %v849, %v964
    %v966 = vsel %vm856, %v852, %v965
    %v967 = vsel %vm859, %v855, %v966
    %v968 = vsel %vm862, %v858, %v967
    %v969 = vsel %vm865, %v861, %v968
    %v972 = vsel %vm850, %v868, %v640
    %v973 = vsel %vm853, %v870, %v972
    %v974 = vsel %vm856, %v872, %v973
    %v975 = vsel %vm859, %v874, %v974
    %v976 = vsel %vm862, %v876, %v975
    %v977 = vsel %vm865, %v878, %v976
    %978 = vrot.lane.b32.xlu0 %v977, 16
    %v979 = vpop.permute.xlu0 %978
    %980 = vrot.lane.b32.xlu0 %v880, 16
    %v981 = vpop.permute.xlu0 %980
    %v984 = vsel %vm125, %v969, %v979
    %v985 = vsel %vm125, %v864, %v981
    %v986 = vrot.slane %v838, 1
    %v987 = vsel %vm847, %v839, %v986
    %v988 = vrot.slane %v840, 7
    %v989 = vsel %vm850, %v988, %v987
    %v990 = vrot.slane %v841, 6
    %v991 = vsel %vm853, %v990, %v989
    %v992 = vrot.slane %v842, 5
    %v993 = vsel %vm856, %v992, %v991
    %v994 = vrot.slane %v843, 4
    %v995 = vsel %vm859, %v994, %v993
    %v996 = vrot.slane %v844, 3
    %v997 = vsel %vm862, %v996, %v995
    %v998 = vrot.slane %v845, 2
    %v999 = vsel %vm865, %v998, %v997
    %1001 = vxpose.xlu0.b32.start [1/16] %v999, 128
    %1002 = vxpose.xlu0.b32.cont [2/16] 0.0, 128
    %1003 = vxpose.xlu0.b32.cont [3/16] 0.0, 128
    %1004 = vxpose.xlu0.b32.cont [4/16] 0.0, 128
    %1005 = vxpose.xlu0.b32.cont [5/16] 0.0, 128
    %1006 = vxpose.xlu0.b32.cont [6/16] 0.0, 128
    %1007 = vxpose.xlu0.b32.cont [7/16] 0.0, 128
    %1008 = vxpose.xlu0.b32.cont [8/16] 0.0, 128
    %1009 = vxpose.xlu0.b32.cont [9/16] 0.0, 128
    %1010 = vxpose.xlu0.b32.cont [10/16] 0.0, 128
    %1011 = vxpose.xlu0.b32.cont [11/16] 0.0, 128
    %1012 = vxpose.xlu0.b32.cont [12/16] 0.0, 128
    %1013 = vxpose.xlu0.b32.cont [13/16] 0.0, 128
    %1014 = vxpose.xlu0.b32.cont [14/16] 0.0, 128
    %1015 = vxpose.xlu0.b32.cont [15/16] 0.0, 128
    %1016 = vxpose.xlu0.b32.end [16/16] 0.0, 128
    %v1017 = vpop.trf.xlu0
    %v1018 = vpop.trf.xlu0
    %v1019 = vpop.trf.xlu0
    %v1020 = vpop.trf.xlu0
    %v1021 = vpop.trf.xlu0
    %v1022 = vpop.trf.xlu0
    %v1023 = vpop.trf.xlu0
    %v1024 = vpop.trf.xlu0
    %v1025 = vpop.trf.xlu0
    %v1026 = vpop.trf.xlu0
    %v1027 = vpop.trf.xlu0
    %v1028 = vpop.trf.xlu0
    %v1029 = vpop.trf.xlu0
    %v1030 = vpop.trf.xlu0
    %v1031 = vpop.trf.xlu0
    %v1032 = vpop.trf.xlu0
    %vm1035 = vcmask 1046528
    %v1036 = vrot.slane %v984, 1
    %v1037 = vrot.slane %v985, 1
    %v1038 = vsel %vm1035, %v1036, %v1037
    %v1041 = vsel %vm782, %v1017, 0
    %1043 = vmatpush.msra.mxu0 0.0
    %1044 = vmatpush.msra.mxu0 0.0
    %1045 = vmatpush.msra.mxu0 0.0
    %1046 = vmatpush.msra.mxu0 0.0
    %1047 = vmatpush.msra.mxu0 0.0
    %1048 = vmatpush.msra.mxu0 0.0
    %1049 = vmatpush.msra.mxu0 0.0
    %1050 = vmatpush.msra.mxu0 0.0
    %1051 = vmatpush.msra.mxu0 0.0
    %1052 = vmatpush.msra.mxu0 0.0
    %1053 = vmatpush.msra.mxu0 0.0
    %1054 = vmatpush.msra.mxu0 0.0
    %1055 = vmatpush.msra.mxu0 0.0
    %1056 = vmatpush.msra.mxu0 0.0
    %1057 = vmatpush.msra.mxu0 0.0
    %1058 = vmatpush.msra.mxu0 %v1038
    %1059 = vmatmul.f32.gmra.mxu0 %v1041
    %v1060 = vpop.f32.mrf.mxu0
    %v1061 = vadd.f32 0.0, %v1060
    %1062 = vdwg.mxu0
    %v1063 = vsel %vm853, %v846, %v632
    %v1064 = vsel %vm856, %v849, %v1063
    %v1065 = vsel %vm859, %v852, %v1064
    %v1066 = vsel %vm862, %v855, %v1065
    %v1067 = vsel %vm865, %v858, %v1066
    %v1068 = vsel %vm847, %v864, %v861
    %v1071 = vsel %vm853, %v868, %v640
    %v1072 = vsel %vm856, %v870, %v1071
    %v1073 = vsel %vm859, %v872, %v1072
    %v1074 = vsel %vm862, %v874, %v1073
    %v1075 = vsel %vm865, %v876, %v1074
    %v1076 = vsel %vm847, %v880, %v878
    %1077 = vrot.lane.b32.xlu0 %v1075, 16
    %v1078 = vpop.permute.xlu0 %1077
    %1079 = vrot.lane.b32.xlu0 %v1076, 16
    %v1080 = vpop.permute.xlu0 %1079
    %v1083 = vsel %vm125, %v1067, %v1078
    %v1084 = vsel %vm125, %v1068, %v1080
    %v1085 = vrot.slane %v838, 2
    %v1086 = vrot.slane %v839, 1
    %v1087 = vsel %vm847, %v1086, %v1085
    %v1088 = vsel %vm850, %v840, %v1087
    %v1089 = vrot.slane %v841, 7
    %v1090 = vsel %vm853, %v1089, %v1088
    %v1091 = vrot.slane %v842, 6
    %v1092 = vsel %vm856, %v1091, %v1090
    %v1093 = vrot.slane %v843, 5
    %v1094 = vsel %vm859, %v1093, %v1092
    %v1095 = vrot.slane %v844, 4
    %v1096 = vsel %vm862, %v1095, %v1094
    %v1097 = vrot.slane %v845, 3
    %v1098 = vsel %vm865, %v1097, %v1096
    %1100 = vxpose.xlu0.b32.start [1/16] %v1098, 128
    %1101 = vxpose.xlu0.b32.cont [2/16] 0.0, 128
    %1102 = vxpose.xlu0.b32.cont [3/16] 0.0, 128
    %1103 = vxpose.xlu0.b32.cont [4/16] 0.0, 128
    %1104 = vxpose.xlu0.b32.cont [5/16] 0.0, 128
    %1105 = vxpose.xlu0.b32.cont [6/16] 0.0, 128
    %1106 = vxpose.xlu0.b32.cont [7/16] 0.0, 128
    %1107 = vxpose.xlu0.b32.cont [8/16] 0.0, 128
    %1108 = vxpose.xlu0.b32.cont [9/16] 0.0, 128
    %1109 = vxpose.xlu0.b32.cont [10/16] 0.0, 128
    %1110 = vxpose.xlu0.b32.cont [11/16] 0.0, 128
    %1111 = vxpose.xlu0.b32.cont [12/16] 0.0, 128
    %1112 = vxpose.xlu0.b32.cont [13/16] 0.0, 128
    %1113 = vxpose.xlu0.b32.cont [14/16] 0.0, 128
    %1114 = vxpose.xlu0.b32.cont [15/16] 0.0, 128
    %1115 = vxpose.xlu0.b32.end [16/16] 0.0, 128
    %v1116 = vpop.trf.xlu0
    %v1117 = vpop.trf.xlu0
    %v1118 = vpop.trf.xlu0
    %v1119 = vpop.trf.xlu0
    %v1120 = vpop.trf.xlu0
    %v1121 = vpop.trf.xlu0
    %v1122 = vpop.trf.xlu0
    %v1123 = vpop.trf.xlu0
    %v1124 = vpop.trf.xlu0
    %v1125 = vpop.trf.xlu0
    %v1126 = vpop.trf.xlu0
    %v1127 = vpop.trf.xlu0
    %v1128 = vpop.trf.xlu0
    %v1129 = vpop.trf.xlu0
    %v1130 = vpop.trf.xlu0
    %v1131 = vpop.trf.xlu0
    %vm1134 = vcmask 1045504
    %v1135 = vrot.slane %v1083, 2
    %v1136 = vrot.slane %v1084, 2
    %v1137 = vsel %vm1134, %v1135, %v1136
    %v1140 = vsel %vm782, %v1116, 0
    %1142 = vmatpush.msra.mxu0 0.0
    %1143 = vmatpush.msra.mxu0 0.0
    %1144 = vmatpush.msra.mxu0 0.0
    %1145 = vmatpush.msra.mxu0 0.0
    %1146 = vmatpush.msra.mxu0 0.0
    %1147 = vmatpush.msra.mxu0 0.0
    %1148 = vmatpush.msra.mxu0 0.0
    %1149 = vmatpush.msra.mxu0 0.0
    %1150 = vmatpush.msra.mxu0 0.0
    %1151 = vmatpush.msra.mxu0 0.0
    %1152 = vmatpush.msra.mxu0 0.0
    %1153 = vmatpush.msra.mxu0 0.0
    %1154 = vmatpush.msra.mxu0 0.0
    %1155 = vmatpush.msra.mxu0 0.0
    %1156 = vmatpush.msra.mxu0 0.0
    %1157 = vmatpush.msra.mxu0 %v1137
    %1158 = vmatmul.f32.gmra.mxu0 %v1140
    %v1159 = vpop.f32.mrf.mxu0
    %v1160 = vadd.f32 0.0, %v1159
    %1161 = vdwg.mxu0
    %v1162 = vsel %vm856, %v846, %v632
    %v1163 = vsel %vm859, %v849, %v1162
    %v1164 = vsel %vm862, %v852, %v1163
    %v1165 = vsel %vm865, %v855, %v1164
    %v1166 = vsel %vm847, %v861, %v858
    %v1167 = vsel %vm850, %v864, %v1166
    %v1170 = vsel %vm856, %v868, %v640
    %v1171 = vsel %vm859, %v870, %v1170
    %v1172 = vsel %vm862, %v872, %v1171
    %v1173 = vsel %vm865, %v874, %v1172
    %v1174 = vsel %vm847, %v878, %v876
    %v1175 = vsel %vm850, %v880, %v1174
    %1176 = vrot.lane.b32.xlu0 %v1173, 16
    %v1177 = vpop.permute.xlu0 %1176
    %1178 = vrot.lane.b32.xlu0 %v1175, 16
    %v1179 = vpop.permute.xlu0 %1178
    %v1182 = vsel %vm125, %v1165, %v1177
    %v1183 = vsel %vm125, %v1167, %v1179
    %v1184 = vrot.slane %v838, 3
    %v1185 = vrot.slane %v839, 2
    %v1186 = vsel %vm847, %v1185, %v1184
    %v1187 = vrot.slane %v840, 1
    %v1188 = vsel %vm850, %v1187, %v1186
    %v1189 = vsel %vm853, %v841, %v1188
    %v1190 = vrot.slane %v842, 7
    %v1191 = vsel %vm856, %v1190, %v1189
    %v1192 = vrot.slane %v843, 6
    %v1193 = vsel %vm859, %v1192, %v1191
    %v1194 = vrot.slane %v844, 5
    %v1195 = vsel %vm862, %v1194, %v1193
    %v1196 = vrot.slane %v845, 4
    %v1197 = vsel %vm865, %v1196, %v1195
    %1199 = vxpose.xlu0.b32.start [1/16] %v1197, 128
    %1200 = vxpose.xlu0.b32.cont [2/16] 0.0, 128
    %1201 = vxpose.xlu0.b32.cont [3/16] 0.0, 128
    %1202 = vxpose.xlu0.b32.cont [4/16] 0.0, 128
    %1203 = vxpose.xlu0.b32.cont [5/16] 0.0, 128
    %1204 = vxpose.xlu0.b32.cont [6/16] 0.0, 128
    %1205 = vxpose.xlu0.b32.cont [7/16] 0.0, 128
    %1206 = vxpose.xlu0.b32.cont [8/16] 0.0, 128
    %1207 = vxpose.xlu0.b32.cont [9/16] 0.0, 128
    %1208 = vxpose.xlu0.b32.cont [10/16] 0.0, 128
    %1209 = vxpose.xlu0.b32.cont [11/16] 0.0, 128
    %1210 = vxpose.xlu0.b32.cont [12/16] 0.0, 128
    %1211 = vxpose.xlu0.b32.cont [13/16] 0.0, 128
    %1212 = vxpose.xlu0.b32.cont [14/16] 0.0, 128
    %1213 = vxpose.xlu0.b32.cont [15/16] 0.0, 128
    %1214 = vxpose.xlu0.b32.end [16/16] 0.0, 128
    %v1215 = vpop.trf.xlu0
    %v1216 = vpop.trf.xlu0
    %v1217 = vpop.trf.xlu0
    %v1218 = vpop.trf.xlu0
    %v1219 = vpop.trf.xlu0
    %v1220 = vpop.trf.xlu0
    %v1221 = vpop.trf.xlu0
    %v1222 = vpop.trf.xlu0
    %v1223 = vpop.trf.xlu0
    %v1224 = vpop.trf.xlu0
    %v1225 = vpop.trf.xlu0
    %v1226 = vpop.trf.xlu0
    %v1227 = vpop.trf.xlu0
    %v1228 = vpop.trf.xlu0
    %v1229 = vpop.trf.xlu0
    %v1230 = vpop.trf.xlu0
    %vm1233 = vcmask 1044480
    %v1234 = vrot.slane %v1182, 3
    %v1235 = vrot.slane %v1183, 3
    %v1236 = vsel %vm1233, %v1234, %v1235
    %v1239 = vsel %vm782, %v1215, 0
    %1241 = vmatpush.msra.mxu0 0.0
    %1242 = vmatpush.msra.mxu0 0.0
    %1243 = vmatpush.msra.mxu0 0.0
    %1244 = vmatpush.msra.mxu0 0.0
    %1245 = vmatpush.msra.mxu0 0.0
    %1246 = vmatpush.msra.mxu0 0.0
    %1247 = vmatpush.msra.mxu0 0.0
    %1248 = vmatpush.msra.mxu0 0.0
    %1249 = vmatpush.msra.mxu0 0.0
    %1250 = vmatpush.msra.mxu0 0.0
    %1251 = vmatpush.msra.mxu0 0.0
    %1252 = vmatpush.msra.mxu0 0.0
    %1253 = vmatpush.msra.mxu0 0.0
    %1254 = vmatpush.msra.mxu0 0.0
    %1255 = vmatpush.msra.mxu0 0.0
    %1256 = vmatpush.msra.mxu0 %v1236
    %1257 = vmatmul.f32.gmra.mxu0 %v1239
    %v1258 = vpop.f32.mrf.mxu0
    %v1259 = vadd.f32 0.0, %v1258
    %1260 = vdwg.mxu0
    %v1261 = vsel %vm859, %v846, %v632
    %v1262 = vsel %vm862, %v849, %v1261
    %v1263 = vsel %vm865, %v852, %v1262
    %v1264 = vsel %vm847, %v858, %v855
    %v1265 = vsel %vm850, %v861, %v1264
    %v1266 = vsel %vm853, %v864, %v1265
    %v1269 = vsel %vm859, %v868, %v640
    %v1270 = vsel %vm862, %v870, %v1269
    %v1271 = vsel %vm865, %v872, %v1270
    %v1272 = vsel %vm847, %v876, %v874
    %v1273 = vsel %vm850, %v878, %v1272
    %v1274 = vsel %vm853, %v880, %v1273
    %1275 = vrot.lane.b32.xlu0 %v1271, 16
    %v1276 = vpop.permute.xlu0 %1275
    %1277 = vrot.lane.b32.xlu0 %v1274, 16
    %v1278 = vpop.permute.xlu0 %1277
    %v1281 = vsel %vm125, %v1263, %v1276
    %v1282 = vsel %vm125, %v1266, %v1278
    %v1283 = vrot.slane %v838, 4
    %v1284 = vrot.slane %v839, 3
    %v1285 = vsel %vm847, %v1284, %v1283
    %v1286 = vrot.slane %v840, 2
    %v1287 = vsel %vm850, %v1286, %v1285
    %v1288 = vrot.slane %v841, 1
    %v1289 = vsel %vm853, %v1288, %v1287
    %v1290 = vsel %vm856, %v842, %v1289
    %v1291 = vrot.slane %v843, 7
    %v1292 = vsel %vm859, %v1291, %v1290
    %v1293 = vrot.slane %v844, 6
    %v1294 = vsel %vm862, %v1293, %v1292
    %v1295 = vrot.slane %v845, 5
    %v1296 = vsel %vm865, %v1295, %v1294
    %1298 = vxpose.xlu0.b32.start [1/16] %v1296, 128
    %1299 = vxpose.xlu0.b32.cont [2/16] 0.0, 128
    %1300 = vxpose.xlu0.b32.cont [3/16] 0.0, 128
    %1301 = vxpose.xlu0.b32.cont [4/16] 0.0, 128
    %1302 = vxpose.xlu0.b32.cont [5/16] 0.0, 128
    %1303 = vxpose.xlu0.b32.cont [6/16] 0.0, 128
    %1304 = vxpose.xlu0.b32.cont [7/16] 0.0, 128
    %1305 = vxpose.xlu0.b32.cont [8/16] 0.0, 128
    %1306 = vxpose.xlu0.b32.cont [9/16] 0.0, 128
    %1307 = vxpose.xlu0.b32.cont [10/16] 0.0, 128
    %1308 = vxpose.xlu0.b32.cont [11/16] 0.0, 128
    %1309 = vxpose.xlu0.b32.cont [12/16] 0.0, 128
    %1310 = vxpose.xlu0.b32.cont [13/16] 0.0, 128
    %1311 = vxpose.xlu0.b32.cont [14/16] 0.0, 128
    %1312 = vxpose.xlu0.b32.cont [15/16] 0.0, 128
    %1313 = vxpose.xlu0.b32.end [16/16] 0.0, 128
    %v1314 = vpop.trf.xlu0
    %v1315 = vpop.trf.xlu0
    %v1316 = vpop.trf.xlu0
    %v1317 = vpop.trf.xlu0
    %v1318 = vpop.trf.xlu0
    %v1319 = vpop.trf.xlu0
    %v1320 = vpop.trf.xlu0
    %v1321 = vpop.trf.xlu0
    %v1322 = vpop.trf.xlu0
    %v1323 = vpop.trf.xlu0
    %v1324 = vpop.trf.xlu0
    %v1325 = vpop.trf.xlu0
    %v1326 = vpop.trf.xlu0
    %v1327 = vpop.trf.xlu0
    %v1328 = vpop.trf.xlu0
    %v1329 = vpop.trf.xlu0
    %vm1332 = vcmask 1043456
    %v1333 = vrot.slane %v1281, 4
    %v1334 = vrot.slane %v1282, 4
    %v1335 = vsel %vm1332, %v1333, %v1334
    %v1338 = vsel %vm782, %v1314, 0
    %1340 = vmatpush.msra.mxu0 0.0
    %1341 = vmatpush.msra.mxu0 0.0
    %1342 = vmatpush.msra.mxu0 0.0
    %1343 = vmatpush.msra.mxu0 0.0
    %1344 = vmatpush.msra.mxu0 0.0
    %1345 = vmatpush.msra.mxu0 0.0
    %1346 = vmatpush.msra.mxu0 0.0
    %1347 = vmatpush.msra.mxu0 0.0
    %1348 = vmatpush.msra.mxu0 0.0
    %1349 = vmatpush.msra.mxu0 0.0
    %1350 = vmatpush.msra.mxu0 0.0
    %1351 = vmatpush.msra.mxu0 0.0
    %1352 = vmatpush.msra.mxu0 0.0
    %1353 = vmatpush.msra.mxu0 0.0
    %1354 = vmatpush.msra.mxu0 0.0
    %1355 = vmatpush.msra.mxu0 %v1335
    %1356 = vmatmul.f32.gmra.mxu0 %v1338
    %v1357 = vpop.f32.mrf.mxu0
    %v1358 = vadd.f32 0.0, %v1357
    %1359 = vdwg.mxu0
    %v1360 = vsel %vm862, %v846, %v632
    %v1361 = vsel %vm865, %v849, %v1360
    %v1362 = vsel %vm847, %v855, %v852
    %v1363 = vsel %vm850, %v858, %v1362
    %v1364 = vsel %vm853, %v861, %v1363
    %v1365 = vsel %vm856, %v864, %v1364
    %v1368 = vsel %vm862, %v868, %v640
    %v1369 = vsel %vm865, %v870, %v1368
    %v1370 = vsel %vm847, %v874, %v872
    %v1371 = vsel %vm850, %v876, %v1370
    %v1372 = vsel %vm853, %v878, %v1371
    %v1373 = vsel %vm856, %v880, %v1372
    %1374 = vrot.lane.b32.xlu0 %v1369, 16
    %v1375 = vpop.permute.xlu0 %1374
    %1376 = vrot.lane.b32.xlu0 %v1373, 16
    %v1377 = vpop.permute.xlu0 %1376
    %v1380 = vsel %vm125, %v1361, %v1375
    %v1381 = vsel %vm125, %v1365, %v1377
    %v1382 = vrot.slane %v838, 5
    %v1383 = vrot.slane %v839, 4
    %v1384 = vsel %vm847, %v1383, %v1382
    %v1385 = vrot.slane %v840, 3
    %v1386 = vsel %vm850, %v1385, %v1384
    %v1387 = vrot.slane %v841, 2
    %v1388 = vsel %vm853, %v1387, %v1386
    %v1389 = vrot.slane %v842, 1
    %v1390 = vsel %vm856, %v1389, %v1388
    %v1391 = vsel %vm859, %v843, %v1390
    %v1392 = vrot.slane %v844, 7
    %v1393 = vsel %vm862, %v1392, %v1391
    %v1394 = vrot.slane %v845, 6
    %v1395 = vsel %vm865, %v1394, %v1393
    %1397 = vxpose.xlu0.b32.start [1/16] %v1395, 128
    %1398 = vxpose.xlu0.b32.cont [2/16] 0.0, 128
    %1399 = vxpose.xlu0.b32.cont [3/16] 0.0, 128
    %1400 = vxpose.xlu0.b32.cont [4/16] 0.0, 128
    %1401 = vxpose.xlu0.b32.cont [5/16] 0.0, 128
    %1402 = vxpose.xlu0.b32.cont [6/16] 0.0, 128
    %1403 = vxpose.xlu0.b32.cont [7/16] 0.0, 128
    %1404 = vxpose.xlu0.b32.cont [8/16] 0.0, 128
    %1405 = vxpose.xlu0.b32.cont [9/16] 0.0, 128
    %1406 = vxpose.xlu0.b32.cont [10/16] 0.0, 128
    %1407 = vxpose.xlu0.b32.cont [11/16] 0.0, 128
    %1408 = vxpose.xlu0.b32.cont [12/16] 0.0, 128
    %1409 = vxpose.xlu0.b32.cont [13/16] 0.0, 128
    %1410 = vxpose.xlu0.b32.cont [14/16] 0.0, 128
    %1411 = vxpose.xlu0.b32.cont [15/16] 0.0, 128
    %1412 = vxpose.xlu0.b32.end [16/16] 0.0, 128
    %v1413 = vpop.trf.xlu0
    %v1414 = vpop.trf.xlu0
    %v1415 = vpop.trf.xlu0
    %v1416 = vpop.trf.xlu0
    %v1417 = vpop.trf.xlu0
    %v1418 = vpop.trf.xlu0
    %v1419 = vpop.trf.xlu0
    %v1420 = vpop.trf.xlu0
    %v1421 = vpop.trf.xlu0
    %v1422 = vpop.trf.xlu0
    %v1423 = vpop.trf.xlu0
    %v1424 = vpop.trf.xlu0
    %v1425 = vpop.trf.xlu0
    %v1426 = vpop.trf.xlu0
    %v1427 = vpop.trf.xlu0
    %v1428 = vpop.trf.xlu0
    %vm1431 = vcmask 1042432
    %v1432 = vrot.slane %v1380, 5
    %v1433 = vrot.slane %v1381, 5
    %v1434 = vsel %vm1431, %v1432, %v1433
    %v1437 = vsel %vm782, %v1413, 0
    %1439 = vmatpush.msra.mxu0 0.0
    %1440 = vmatpush.msra.mxu0 0.0
    %1441 = vmatpush.msra.mxu0 0.0
    %1442 = vmatpush.msra.mxu0 0.0
    %1443 = vmatpush.msra.mxu0 0.0
    %1444 = vmatpush.msra.mxu0 0.0
    %1445 = vmatpush.msra.mxu0 0.0
    %1446 = vmatpush.msra.mxu0 0.0
    %1447 = vmatpush.msra.mxu0 0.0
    %1448 = vmatpush.msra.mxu0 0.0
    %1449 = vmatpush.msra.mxu0 0.0
    %1450 = vmatpush.msra.mxu0 0.0
    %1451 = vmatpush.msra.mxu0 0.0
    %1452 = vmatpush.msra.mxu0 0.0
    %1453 = vmatpush.msra.mxu0 0.0
    %1454 = vmatpush.msra.mxu0 %v1434
    %1455 = vmatmul.f32.gmra.mxu0 %v1437
    %v1456 = vpop.f32.mrf.mxu0
    %v1457 = vadd.f32 0.0, %v1456
    %1458 = vdwg.mxu0
    %v1459 = vsel %vm865, %v846, %v632
    %v1460 = vsel %vm847, %v852, %v849
    %v1461 = vsel %vm850, %v855, %v1460
    %v1462 = vsel %vm853, %v858, %v1461
    %v1463 = vsel %vm856, %v861, %v1462
    %v1464 = vsel %vm859, %v864, %v1463
    %v1467 = vsel %vm865, %v868, %v640
    %v1468 = vsel %vm847, %v872, %v870
    %v1469 = vsel %vm850, %v874, %v1468
    %v1470 = vsel %vm853, %v876, %v1469
    %v1471 = vsel %vm856, %v878, %v1470
    %v1472 = vsel %vm859, %v880, %v1471
    %1473 = vrot.lane.b32.xlu0 %v1467, 16
    %v1474 = vpop.permute.xlu0 %1473
    %1475 = vrot.lane.b32.xlu0 %v1472, 16
    %v1476 = vpop.permute.xlu0 %1475
    %v1479 = vsel %vm125, %v1459, %v1474
    %v1480 = vsel %vm125, %v1464, %v1476
    %v1481 = vrot.slane %v838, 6
    %v1482 = vrot.slane %v839, 5
    %v1483 = vsel %vm847, %v1482, %v1481
    %v1484 = vrot.slane %v840, 4
    %v1485 = vsel %vm850, %v1484, %v1483
    %v1486 = vrot.slane %v841, 3
    %v1487 = vsel %vm853, %v1486, %v1485
    %v1488 = vrot.slane %v842, 2
    %v1489 = vsel %vm856, %v1488, %v1487
    %v1490 = vrot.slane %v843, 1
    %v1491 = vsel %vm859, %v1490, %v1489
    %v1492 = vsel %vm862, %v844, %v1491
    %v1493 = vrot.slane %v845, 7
    %v1494 = vsel %vm865, %v1493, %v1492
    %1496 = vxpose.xlu0.b32.start [1/16] %v1494, 128
    %1497 = vxpose.xlu0.b32.cont [2/16] 0.0, 128
    %1498 = vxpose.xlu0.b32.cont [3/16] 0.0, 128
    %1499 = vxpose.xlu0.b32.cont [4/16] 0.0, 128
    %1500 = vxpose.xlu0.b32.cont [5/16] 0.0, 128
    %1501 = vxpose.xlu0.b32.cont [6/16] 0.0, 128
    %1502 = vxpose.xlu0.b32.cont [7/16] 0.0, 128
    %1503 = vxpose.xlu0.b32.cont [8/16] 0.0, 128
    %1504 = vxpose.xlu0.b32.cont [9/16] 0.0, 128
    %1505 = vxpose.xlu0.b32.cont [10/16] 0.0, 128
    %1506 = vxpose.xlu0.b32.cont [11/16] 0.0, 128
    %1507 = vxpose.xlu0.b32.cont [12/16] 0.0, 128
    %1508 = vxpose.xlu0.b32.cont [13/16] 0.0, 128
    %1509 = vxpose.xlu0.b32.cont [14/16] 0.0, 128
    %1510 = vxpose.xlu0.b32.cont [15/16] 0.0, 128
    %1511 = vxpose.xlu0.b32.end [16/16] 0.0, 128
    %v1512 = vpop.trf.xlu0
    %v1513 = vpop.trf.xlu0
    %v1514 = vpop.trf.xlu0
    %v1515 = vpop.trf.xlu0
    %v1516 = vpop.trf.xlu0
    %v1517 = vpop.trf.xlu0
    %v1518 = vpop.trf.xlu0
    %v1519 = vpop.trf.xlu0
    %v1520 = vpop.trf.xlu0
    %v1521 = vpop.trf.xlu0
    %v1522 = vpop.trf.xlu0
    %v1523 = vpop.trf.xlu0
    %v1524 = vpop.trf.xlu0
    %v1525 = vpop.trf.xlu0
    %v1526 = vpop.trf.xlu0
    %v1527 = vpop.trf.xlu0
    %vm1530 = vcmask 1041408
    %v1531 = vrot.slane %v1479, 6
    %v1532 = vrot.slane %v1480, 6
    %v1533 = vsel %vm1530, %v1531, %v1532
    %v1536 = vsel %vm782, %v1512, 0
    %1538 = vmatpush.msra.mxu0 0.0
    %1539 = vmatpush.msra.mxu0 0.0
    %1540 = vmatpush.msra.mxu0 0.0
    %1541 = vmatpush.msra.mxu0 0.0
    %1542 = vmatpush.msra.mxu0 0.0
    %1543 = vmatpush.msra.mxu0 0.0
    %1544 = vmatpush.msra.mxu0 0.0
    %1545 = vmatpush.msra.mxu0 0.0
    %1546 = vmatpush.msra.mxu0 0.0
    %1547 = vmatpush.msra.mxu0 0.0
    %1548 = vmatpush.msra.mxu0 0.0
    %1549 = vmatpush.msra.mxu0 0.0
    %1550 = vmatpush.msra.mxu0 0.0
    %1551 = vmatpush.msra.mxu0 0.0
    %1552 = vmatpush.msra.mxu0 0.0
    %1553 = vmatpush.msra.mxu0 %v1533
    %1554 = vmatmul.f32.gmra.mxu0 %v1536
    %v1555 = vpop.f32.mrf.mxu0
    %v1556 = vadd.f32 0.0, %v1555
    %1557 = vdwg.mxu0
    %v1558 = vsel %vm847, %v849, %v846
    %v1559 = vsel %vm850, %v852, %v1558
    %v1560 = vsel %vm853, %v855, %v1559
    %v1561 = vsel %vm856, %v858, %v1560
    %v1562 = vsel %vm859, %v861, %v1561
    %v1563 = vsel %vm862, %v864, %v1562
    %v1566 = vsel %vm847, %v870, %v868
    %v1567 = vsel %vm850, %v872, %v1566
    %v1568 = vsel %vm853, %v874, %v1567
    %v1569 = vsel %vm856, %v876, %v1568
    %v1570 = vsel %vm859, %v878, %v1569
    %v1571 = vsel %vm862, %v880, %v1570
    %1572 = vrot.lane.b32.xlu0 %v640, 16
    %v1573 = vpop.permute.xlu0 %1572
    %1574 = vrot.lane.b32.xlu0 %v1571, 16
    %v1575 = vpop.permute.xlu0 %1574
    %v1578 = vsel %vm125, %v632, %v1573
    %v1579 = vsel %vm125, %v1563, %v1575
    %v1580 = vrot.slane %v838, 7
    %v1581 = vrot.slane %v839, 6
    %v1582 = vsel %vm847, %v1581, %v1580
    %v1583 = vrot.slane %v840, 5
    %v1584 = vsel %vm850, %v1583, %v1582
    %v1585 = vrot.slane %v841, 4
    %v1586 = vsel %vm853, %v1585, %v1584
    %v1587 = vrot.slane %v842, 3
    %v1588 = vsel %vm856, %v1587, %v1586
    %v1589 = vrot.slane %v843, 2
    %v1590 = vsel %vm859, %v1589, %v1588
    %v1591 = vrot.slane %v844, 1
    %v1592 = vsel %vm862, %v1591, %v1590
    %v1593 = vsel %vm865, %v845, %v1592
    %1595 = vxpose.xlu0.b32.start [1/16] %v1593, 128
    %1596 = vxpose.xlu0.b32.cont [2/16] 0.0, 128
    %1597 = vxpose.xlu0.b32.cont [3/16] 0.0, 128
    %1598 = vxpose.xlu0.b32.cont [4/16] 0.0, 128
    %1599 = vxpose.xlu0.b32.cont [5/16] 0.0, 128
    %1600 = vxpose.xlu0.b32.cont [6/16] 0.0, 128
    %1601 = vxpose.xlu0.b32.cont [7/16] 0.0, 128
    %1602 = vxpose.xlu0.b32.cont [8/16] 0.0, 128
    %1603 = vxpose.xlu0.b32.cont [9/16] 0.0, 128
    %1604 = vxpose.xlu0.b32.cont [10/16] 0.0, 128
    %1605 = vxpose.xlu0.b32.cont [11/16] 0.0, 128
    %1606 = vxpose.xlu0.b32.cont [12/16] 0.0, 128
    %1607 = vxpose.xlu0.b32.cont [13/16] 0.0, 128
    %1608 = vxpose.xlu0.b32.cont [14/16] 0.0, 128
    %1609 = vxpose.xlu0.b32.cont [15/16] 0.0, 128
    %1610 = vxpose.xlu0.b32.end [16/16] 0.0, 128
    %v1611 = vpop.trf.xlu0
    %v1612 = vpop.trf.xlu0
    %v1613 = vpop.trf.xlu0
    %v1614 = vpop.trf.xlu0
    %v1615 = vpop.trf.xlu0
    %v1616 = vpop.trf.xlu0
    %v1617 = vpop.trf.xlu0
    %v1618 = vpop.trf.xlu0
    %v1619 = vpop.trf.xlu0
    %v1620 = vpop.trf.xlu0
    %v1621 = vpop.trf.xlu0
    %v1622 = vpop.trf.xlu0
    %v1623 = vpop.trf.xlu0
    %v1624 = vpop.trf.xlu0
    %v1625 = vpop.trf.xlu0
    %v1626 = vpop.trf.xlu0
    %vm1629 = vcmask 1040384
    %v1630 = vrot.slane %v1578, 7
    %v1631 = vrot.slane %v1579, 7
    %v1632 = vsel %vm1629, %v1630, %v1631
    %v1635 = vsel %vm782, %v1611, 0
    %1637 = vmatpush.msra.mxu0 0.0
    %1638 = vmatpush.msra.mxu0 0.0
    %1639 = vmatpush.msra.mxu0 0.0
    %1640 = vmatpush.msra.mxu0 0.0
    %1641 = vmatpush.msra.mxu0 0.0
    %1642 = vmatpush.msra.mxu0 0.0
    %1643 = vmatpush.msra.mxu0 0.0
    %1644 = vmatpush.msra.mxu0 0.0
    %1645 = vmatpush.msra.mxu0 0.0
    %1646 = vmatpush.msra.mxu0 0.0
    %1647 = vmatpush.msra.mxu0 0.0
    %1648 = vmatpush.msra.mxu0 0.0
    %1649 = vmatpush.msra.mxu0 0.0
    %1650 = vmatpush.msra.mxu0 0.0
    %1651 = vmatpush.msra.mxu0 0.0
    %1652 = vmatpush.msra.mxu0 %v1632
    %1653 = vmatmul.f32.gmra.mxu0 %v1635
    %v1654 = vpop.f32.mrf.mxu0
    %v1655 = vadd.f32 0.0, %v1654
    %1656 = vdwg.mxu0
    %v1658 = vrot.slane %v962, 1
    %v1659 = vrot.slane %v962, 2
    %v1660 = vrot.slane %v962, 3
    %v1661 = vrot.slane %v962, 4
    %v1662 = vrot.slane %v962, 5
    %v1663 = vrot.slane %v962, 6
    %v1664 = vrot.slane %v962, 7
    %v1673 = vrot.slane %v1061, 1
    %v1674 = vrot.slane %v1061, 2
    %v1675 = vrot.slane %v1061, 3
    %v1676 = vrot.slane %v1061, 4
    %v1677 = vrot.slane %v1061, 5
    %v1678 = vrot.slane %v1061, 6
    %v1679 = vrot.slane %v1061, 7
    %v1681 = vrot.slane %v1160, 1
    %v1682 = vrot.slane %v1160, 2
    %v1683 = vrot.slane %v1160, 3
    %v1684 = vrot.slane %v1160, 4
    %v1685 = vrot.slane %v1160, 5
    %v1686 = vrot.slane %v1160, 6
    %v1687 = vrot.slane %v1160, 7
    %v1689 = vrot.slane %v1259, 1
    %v1690 = vrot.slane %v1259, 2
    %v1691 = vrot.slane %v1259, 3
    %v1692 = vrot.slane %v1259, 4
    %v1693 = vrot.slane %v1259, 5
    %v1694 = vrot.slane %v1259, 6
    %v1695 = vrot.slane %v1259, 7
    %v1697 = vrot.slane %v1358, 1
    %v1698 = vrot.slane %v1358, 2
    %v1699 = vrot.slane %v1358, 3
    %v1700 = vrot.slane %v1358, 4
    %v1701 = vrot.slane %v1358, 5
    %v1702 = vrot.slane %v1358, 6
    %v1703 = vrot.slane %v1358, 7
    %v1705 = vrot.slane %v1457, 1
    %v1706 = vrot.slane %v1457, 2
    %v1707 = vrot.slane %v1457, 3
    %v1708 = vrot.slane %v1457, 4
    %v1709 = vrot.slane %v1457, 5
    %v1710 = vrot.slane %v1457, 6
    %v1711 = vrot.slane %v1457, 7
    %v1713 = vrot.slane %v1556, 1
    %v1714 = vrot.slane %v1556, 2
    %v1715 = vrot.slane %v1556, 3
    %v1716 = vrot.slane %v1556, 4
    %v1717 = vrot.slane %v1556, 5
    %v1718 = vrot.slane %v1556, 6
    %v1719 = vrot.slane %v1556, 7
    %v1721 = vrot.slane %v1655, 1
    %v1722 = vrot.slane %v1655, 2
    %v1723 = vrot.slane %v1655, 3
    %v1724 = vrot.slane %v1655, 4
    %v1725 = vrot.slane %v1655, 5
    %v1726 = vrot.slane %v1655, 6
    %v1727 = vrot.slane %v1655, 7
    %v1728 = vperm.slane %v1061, 0
    %v1729 = vperm.slane %v1673, 0
    %v1730 = vperm.slane %v1674, 0
    %v1731 = vperm.slane %v1675, 0
    %v1732 = vperm.slane %v1676, 0
    %v1733 = vperm.slane %v1677, 0
    %v1734 = vperm.slane %v1678, 0
    %v1735 = vperm.slane %v1679, 0
    %v1744 = vperm.slane %v1160, 0
    %v1745 = vperm.slane %v1681, 0
    %v1746 = vperm.slane %v1682, 0
    %v1747 = vperm.slane %v1683, 0
    %v1748 = vperm.slane %v1684, 0
    %v1749 = vperm.slane %v1685, 0
    %v1750 = vperm.slane %v1686, 0
    %v1751 = vperm.slane %v1687, 0
    %v1760 = vperm.slane %v1259, 0
    %v1761 = vperm.slane %v1689, 0
    %v1762 = vperm.slane %v1690, 0
    %v1763 = vperm.slane %v1691, 0
    %v1764 = vperm.slane %v1692, 0
    %v1765 = vperm.slane %v1693, 0
    %v1766 = vperm.slane %v1694, 0
    %v1767 = vperm.slane %v1695, 0
    %v1776 = vperm.slane %v1358, 0
    %v1777 = vperm.slane %v1697, 0
    %v1778 = vperm.slane %v1698, 0
    %v1779 = vperm.slane %v1699, 0
    %v1780 = vperm.slane %v1700, 0
    %v1781 = vperm.slane %v1701, 0
    %v1782 = vperm.slane %v1702, 0
    %v1783 = vperm.slane %v1703, 0
    %v1792 = vperm.slane %v1457, 0
    %v1793 = vperm.slane %v1705, 0
    %v1794 = vperm.slane %v1706, 0
    %v1795 = vperm.slane %v1707, 0
    %v1796 = vperm.slane %v1708, 0
    %v1797 = vperm.slane %v1709, 0
    %v1798 = vperm.slane %v1710, 0
    %v1799 = vperm.slane %v1711, 0
    %v1808 = vperm.slane %v1556, 0
    %v1809 = vperm.slane %v1713, 0
    %v1810 = vperm.slane %v1714, 0
    %v1811 = vperm.slane %v1715, 0
    %v1812 = vperm.slane %v1716, 0
    %v1813 = vperm.slane %v1717, 0
    %v1814 = vperm.slane %v1718, 0
    %v1815 = vperm.slane %v1719, 0
    %v1824 = vperm.slane %v1655, 0
    %v1825 = vperm.slane %v1721, 0
    %v1826 = vperm.slane %v1722, 0
    %v1827 = vperm.slane %v1723, 0
    %v1828 = vperm.slane %v1724, 0
    %v1829 = vperm.slane %v1725, 0
    %v1830 = vperm.slane %v1726, 0
    %v1831 = vperm.slane %v1727, 0
    %v1840 = vsel %vm1629, %v962, %v1728
    %v1841 = vsel %vm1629, %v1658, %v1729
    %v1842 = vsel %vm1629, %v1659, %v1730
    %v1843 = vsel %vm1629, %v1660, %v1731
    %v1844 = vsel %vm1629, %v1661, %v1732
    %v1845 = vsel %vm1629, %v1662, %v1733
    %v1846 = vsel %vm1629, %v1663, %v1734
    %v1847 = vsel %vm1629, %v1664, %v1735
    %v1848 = vsel %vm1530, %v1840, %v1744
    %v1849 = vsel %vm1530, %v1841, %v1745
    %v1850 = vsel %vm1530, %v1842, %v1746
    %v1851 = vsel %vm1530, %v1843, %v1747
    %v1852 = vsel %vm1530, %v1844, %v1748
    %v1853 = vsel %vm1530, %v1845, %v1749
    %v1854 = vsel %vm1530, %v1846, %v1750
    %v1855 = vsel %vm1530, %v1847, %v1751
    %v1856 = vsel %vm1431, %v1848, %v1760
    %v1857 = vsel %vm1431, %v1849, %v1761
    %v1858 = vsel %vm1431, %v1850, %v1762
    %v1859 = vsel %vm1431, %v1851, %v1763
    %v1860 = vsel %vm1431, %v1852, %v1764
    %v1861 = vsel %vm1431, %v1853, %v1765
    %v1862 = vsel %vm1431, %v1854, %v1766
    %v1863 = vsel %vm1431, %v1855, %v1767
    %v1864 = vsel %vm1332, %v1856, %v1776
    %v1865 = vsel %vm1332, %v1857, %v1777
    %v1866 = vsel %vm1332, %v1858, %v1778
    %v1867 = vsel %vm1332, %v1859, %v1779
    %v1868 = vsel %vm1332, %v1860, %v1780
    %v1869 = vsel %vm1332, %v1861, %v1781
    %v1870 = vsel %vm1332, %v1862, %v1782
    %v1871 = vsel %vm1332, %v1863, %v1783
    %v1872 = vsel %vm1233, %v1864, %v1792
    %v1873 = vsel %vm1233, %v1865, %v1793
    %v1874 = vsel %vm1233, %v1866, %v1794
    %v1875 = vsel %vm1233, %v1867, %v1795
    %v1876 = vsel %vm1233, %v1868, %v1796
    %v1877 = vsel %vm1233, %v1869, %v1797
    %v1878 = vsel %vm1233, %v1870, %v1798
    %v1879 = vsel %vm1233, %v1871, %v1799
    %v1880 = vsel %vm1134, %v1872, %v1808
    %v1881 = vsel %vm1134, %v1873, %v1809
    %v1882 = vsel %vm1134, %v1874, %v1810
    %v1883 = vsel %vm1134, %v1875, %v1811
    %v1884 = vsel %vm1134, %v1876, %v1812
    %v1885 = vsel %vm1134, %v1877, %v1813
    %v1886 = vsel %vm1134, %v1878, %v1814
    %v1887 = vsel %vm1134, %v1879, %v1815
    %v1888 = vsel %vm1035, %v1880, %v1824
    %v1889 = vsel %vm1035, %v1881, %v1825
    %v1890 = vsel %vm1035, %v1882, %v1826
    %v1891 = vsel %vm1035, %v1883, %v1827
    %v1892 = vsel %vm1035, %v1884, %v1828
    %v1893 = vsel %vm1035, %v1885, %v1829
    %v1894 = vsel %vm1035, %v1886, %v1830
    %v1895 = vsel %vm1035, %v1887, %v1831
    %v1896 = vld [vmem:[%s6] sm:$0xff]
    %v1897 = vld [vmem:[%s6 + $0x8] sm:$0xff]
    %v1898 = vld [vmem:[%s6 + $0x10] sm:$0xff]
    %v1899 = vld [vmem:[%s6 + $0x18] sm:$0xff]
    %v1900 = vld [vmem:[%s6 + $0x20] sm:$0xff]
    %v1901 = vld [vmem:[%s6 + $0x28] sm:$0xff]
    %v1902 = vld [vmem:[%s6 + $0x30] sm:$0xff]
    %v1903 = vld [vmem:[%s6 + $0x38] sm:$0xff]
    %v1904 = vld [vmem:[%s6 + $0x40] sm:$0xff]
    %v1905 = vld [vmem:[%s6 + $0x48] sm:$0xff]
    %v1906 = vld [vmem:[%s6 + $0x50] sm:$0xff]
    %v1907 = vld [vmem:[%s6 + $0x58] sm:$0xff]
    %v1908 = vld [vmem:[%s6 + $0x60] sm:$0xff]
    %v1909 = vld [vmem:[%s6 + $0x68] sm:$0xff]
    %v1910 = vld [vmem:[%s6 + $0x70] sm:$0xff]
    %v1911 = vld [vmem:[%s6 + $0x78] sm:$0xff]
    %v1912 = vld [vmem:[%s6 + $0x80] sm:$0xff]
    %v1913 = vld [vmem:[%s6 + $0x88] sm:$0xff]
    %v1914 = vld [vmem:[%s6 + $0x90] sm:$0xff]
    %v1915 = vld [vmem:[%s6 + $0x98] sm:$0xff]
    %v1916 = vld [vmem:[%s6 + $0xa0] sm:$0xff]
    %v1917 = vld [vmem:[%s6 + $0xa8] sm:$0xff]
    %v1918 = vld [vmem:[%s6 + $0xb0] sm:$0xff]
    %v1919 = vld [vmem:[%s6 + $0xb8] sm:$0xff]
    %v1920 = vld [vmem:[%s6 + $0xc0] sm:$0xff]
    %v1921 = vld [vmem:[%s6 + $0xc8] sm:$0xff]
    %v1922 = vld [vmem:[%s6 + $0xd0] sm:$0xff]
    %v1923 = vld [vmem:[%s6 + $0xd8] sm:$0xff]
    %v1924 = vld [vmem:[%s6 + $0xe0] sm:$0xff]
    %v1925 = vld [vmem:[%s6 + $0xe8] sm:$0xff]
    %v1926 = vld [vmem:[%s6 + $0xf0] sm:$0xff]
    %v1927 = vld [vmem:[%s6 + $0xf8] sm:$0xff]
    %v1929 = vsel %vm46, %v1888, 0
    %1931 = vmatpush.msra.mxu0 0.0
    %1932 = vmatpush.msra.mxu0 0.0
    %1933 = vmatpush.msra.mxu0 0.0
    %1934 = vmatpush.msra.mxu0 0.0
    %1935 = vmatpush.msra.mxu0 0.0
    %1936 = vmatpush.msra.mxu0 0.0
    %1937 = vmatpush.msra.mxu0 0.0
    %1938 = vmatpush.msra.mxu0 0.0
    %1939 = vmatpush.msra.mxu0 0.0
    %1940 = vmatpush.msra.mxu0 0.0
    %1941 = vmatpush.msra.mxu0 0.0
    %1942 = vmatpush.msra.mxu0 0.0
    %1943 = vmatpush.msra.mxu0 %v1899
    %1944 = vmatpush.msra.mxu0 %v1898
    %1945 = vmatpush.msra.mxu0 %v1897
    %1946 = vmatpush.msra.mxu0 %v1896
    %1947 = vmatmul.f32.gmra.mxu0 %v1929
    %v1948 = vpop.f32.mrf.mxu0
    %v1949 = vadd.f32 0.0, %v1948
    %1950 = vdwg.mxu0
    %v1952 = vsel %vm46, %v1889, 0
    %1954 = vmatpush.msra.mxu0 0.0
    %1955 = vmatpush.msra.mxu0 0.0
    %1956 = vmatpush.msra.mxu0 0.0
    %1957 = vmatpush.msra.mxu0 0.0
    %1958 = vmatpush.msra.mxu0 0.0
    %1959 = vmatpush.msra.mxu0 0.0
    %1960 = vmatpush.msra.mxu0 0.0
    %1961 = vmatpush.msra.mxu0 0.0
    %1962 = vmatpush.msra.mxu0 0.0
    %1963 = vmatpush.msra.mxu0 0.0
    %1964 = vmatpush.msra.mxu0 0.0
    %1965 = vmatpush.msra.mxu0 0.0
    %1966 = vmatpush.msra.mxu0 %v1903
    %1967 = vmatpush.msra.mxu0 %v1902
    %1968 = vmatpush.msra.mxu0 %v1901
    %1969 = vmatpush.msra.mxu0 %v1900
    %1970 = vmatmul.f32.gmra.mxu0 %v1952
    %v1971 = vpop.f32.mrf.mxu0
    %v1972 = vadd.f32 0.0, %v1971
    %1973 = vdwg.mxu0
    %v1975 = vsel %vm46, %v1890, 0
    %1977 = vmatpush.msra.mxu0 0.0
    %1978 = vmatpush.msra.mxu0 0.0
    %1979 = vmatpush.msra.mxu0 0.0
    %1980 = vmatpush.msra.mxu0 0.0
    %1981 = vmatpush.msra.mxu0 0.0
    %1982 = vmatpush.msra.mxu0 0.0
    %1983 = vmatpush.msra.mxu0 0.0
    %1984 = vmatpush.msra.mxu0 0.0
    %1985 = vmatpush.msra.mxu0 0.0
    %1986 = vmatpush.msra.mxu0 0.0
    %1987 = vmatpush.msra.mxu0 0.0
    %1988 = vmatpush.msra.mxu0 0.0
    %1989 = vmatpush.msra.mxu0 %v1907
    %1990 = vmatpush.msra.mxu0 %v1906
    %1991 = vmatpush.msra.mxu0 %v1905
    %1992 = vmatpush.msra.mxu0 %v1904
    %1993 = vmatmul.f32.gmra.mxu0 %v1975
    %v1994 = vpop.f32.mrf.mxu0
    %v1995 = vadd.f32 0.0, %v1994
    %1996 = vdwg.mxu0
    %v1998 = vsel %vm46, %v1891, 0
    %2000 = vmatpush.msra.mxu0 0.0
    %2001 = vmatpush.msra.mxu0 0.0
    %2002 = vmatpush.msra.mxu0 0.0
    %2003 = vmatpush.msra.mxu0 0.0
    %2004 = vmatpush.msra.mxu0 0.0
    %2005 = vmatpush.msra.mxu0 0.0
    %2006 = vmatpush.msra.mxu0 0.0
    %2007 = vmatpush.msra.mxu0 0.0
    %2008 = vmatpush.msra.mxu0 0.0
    %2009 = vmatpush.msra.mxu0 0.0
    %2010 = vmatpush.msra.mxu0 0.0
    %2011 = vmatpush.msra.mxu0 0.0
    %2012 = vmatpush.msra.mxu0 %v1911
    %2013 = vmatpush.msra.mxu0 %v1910
    %2014 = vmatpush.msra.mxu0 %v1909
    %2015 = vmatpush.msra.mxu0 %v1908
    %2016 = vmatmul.f32.gmra.mxu0 %v1998
    %v2017 = vpop.f32.mrf.mxu0
    %v2018 = vadd.f32 0.0, %v2017
    %2019 = vdwg.mxu0
    %v2021 = vsel %vm46, %v1892, 0
    %2023 = vmatpush.msra.mxu0 0.0
    %2024 = vmatpush.msra.mxu0 0.0
    %2025 = vmatpush.msra.mxu0 0.0
    %2026 = vmatpush.msra.mxu0 0.0
    %2027 = vmatpush.msra.mxu0 0.0
    %2028 = vmatpush.msra.mxu0 0.0
    %2029 = vmatpush.msra.mxu0 0.0
    %2030 = vmatpush.msra.mxu0 0.0
    %2031 = vmatpush.msra.mxu0 0.0
    %2032 = vmatpush.msra.mxu0 0.0
    %2033 = vmatpush.msra.mxu0 0.0
    %2034 = vmatpush.msra.mxu0 0.0
    %2035 = vmatpush.msra.mxu0 %v1915
    %2036 = vmatpush.msra.mxu0 %v1914
    %2037 = vmatpush.msra.mxu0 %v1913
    %2038 = vmatpush.msra.mxu0 %v1912
    %2039 = vmatmul.f32.gmra.mxu0 %v2021
    %v2040 = vpop.f32.mrf.mxu0
    %v2041 = vadd.f32 0.0, %v2040
    %2042 = vdwg.mxu0
    %v2044 = vsel %vm46, %v1893, 0
    %2046 = vmatpush.msra.mxu0 0.0
    %2047 = vmatpush.msra.mxu0 0.0
    %2048 = vmatpush.msra.mxu0 0.0
    %2049 = vmatpush.msra.mxu0 0.0
    %2050 = vmatpush.msra.mxu0 0.0
    %2051 = vmatpush.msra.mxu0 0.0
    %2052 = vmatpush.msra.mxu0 0.0
    %2053 = vmatpush.msra.mxu0 0.0
    %2054 = vmatpush.msra.mxu0 0.0
    %2055 = vmatpush.msra.mxu0 0.0
    %2056 = vmatpush.msra.mxu0 0.0
    %2057 = vmatpush.msra.mxu0 0.0
    %2058 = vmatpush.msra.mxu0 %v1919
    %2059 = vmatpush.msra.mxu0 %v1918
    %2060 = vmatpush.msra.mxu0 %v1917
    %2061 = vmatpush.msra.mxu0 %v1916
    %2062 = vmatmul.f32.gmra.mxu0 %v2044
    %v2063 = vpop.f32.mrf.mxu0
    %v2064 = vadd.f32 0.0, %v2063
    %2065 = vdwg.mxu0
    %v2067 = vsel %vm46, %v1894, 0
    %2069 = vmatpush.msra.mxu0 0.0
    %2070 = vmatpush.msra.mxu0 0.0
    %2071 = vmatpush.msra.mxu0 0.0
    %2072 = vmatpush.msra.mxu0 0.0
    %2073 = vmatpush.msra.mxu0 0.0
    %2074 = vmatpush.msra.mxu0 0.0
    %2075 = vmatpush.msra.mxu0 0.0
    %2076 = vmatpush.msra.mxu0 0.0
    %2077 = vmatpush.msra.mxu0 0.0
    %2078 = vmatpush.msra.mxu0 0.0
    %2079 = vmatpush.msra.mxu0 0.0
    %2080 = vmatpush.msra.mxu0 0.0
    %2081 = vmatpush.msra.mxu0 %v1923
    %2082 = vmatpush.msra.mxu0 %v1922
    %2083 = vmatpush.msra.mxu0 %v1921
    %2084 = vmatpush.msra.mxu0 %v1920
    %2085 = vmatmul.f32.gmra.mxu0 %v2067
    %v2086 = vpop.f32.mrf.mxu0
    %v2087 = vadd.f32 0.0, %v2086
    %2088 = vdwg.mxu0
    %v2090 = vsel %vm46, %v1895, 0
    %2092 = vmatpush.msra.mxu0 0.0
    %2093 = vmatpush.msra.mxu0 0.0
    %2094 = vmatpush.msra.mxu0 0.0
    %2095 = vmatpush.msra.mxu0 0.0
    %2096 = vmatpush.msra.mxu0 0.0
    %2097 = vmatpush.msra.mxu0 0.0
    %2098 = vmatpush.msra.mxu0 0.0
    %2099 = vmatpush.msra.mxu0 0.0
    %2100 = vmatpush.msra.mxu0 0.0
    %2101 = vmatpush.msra.mxu0 0.0
    %2102 = vmatpush.msra.mxu0 0.0
    %2103 = vmatpush.msra.mxu0 0.0
    %2104 = vmatpush.msra.mxu0 %v1927
    %2105 = vmatpush.msra.mxu0 %v1926
    %2106 = vmatpush.msra.mxu0 %v1925
    %2107 = vmatpush.msra.mxu0 %v1924
    %2108 = vmatmul.f32.gmra.mxu0 %v2090
    %v2109 = vpop.f32.mrf.mxu0
    %v2110 = vadd.f32 0.0, %v2109
    %2111 = vdwg.mxu0
    %v2112 = vsel %vm782, %v1949, 0.0
    %v2113 = vsel %vm782, %v1972, 0.0
    %v2114 = vadd.f32 %v2112, %v2113
    %v2115 = vsel %vm782, %v1995, 0.0
    %v2116 = vadd.f32 %v2114, %v2115
    %v2117 = vsel %vm782, %v2018, 0.0
    %v2118 = vadd.f32 %v2116, %v2117
    %v2119 = vsel %vm782, %v2041, 0.0
    %v2120 = vadd.f32 %v2118, %v2119
    %v2121 = vsel %vm782, %v2064, 0.0
    %v2122 = vadd.f32 %v2120, %v2121
    %v2123 = vsel %vm782, %v2087, 0.0
    %v2124 = vadd.f32 %v2122, %v2123
    %v2125 = vsel %vm782, %v2110, 0.0
    %v2126 = vadd.f32 %v2124, %v2125
    %v2127 = vld [vmem:[%s7] sm:$0x1]
    %v2129 = vperm.slane %v2127, 0
    %v2131 = vadd.f32 %v2126, %v2129
    %2132 = vst.msk [vmem:[#allocation5] sm:$0xff] %vm782, %v2131
    // Predicated region
    $region34: #{tpu_custom_call.1} parent=1 // pred_check
      _
    $region35: #{tpu_custom_call.1} parent=1 // pred_check_branch
      %2134 = sbr.rel (0) target = $region37
    $region36: #{tpu_custom_call.1} parent=1 // pred_region
      %2136 = vsyncadd [#allocation6], 0
      %s2138 = sshll.u32 [#allocation5], 4
      %s2139 = int_to_ptr.vmem [resolvable:$true] %s2138
      %s2140 = sshll.u32 %s8, 4
      %s2141 = int_to_ptr.hbm [resolvable:$true] %s2140
      %2143 = dma.vmem_to_hbm [thread:$0]  %s2139, 128, %s2141, [#allocation6]
    $region37: #{tpu_custom_call.1} parent=1 // pred_fallthru
      _
    // Predicated region
    $region38: #{tpu_custom_call.1} parent=1 // pred_check
      _
    $region39: #{tpu_custom_call.1} parent=1 // pred_check_branch
      %2145 = sbr.rel (0) target = $region41
    $region40: #{tpu_custom_call.1} parent=1 // pred_region
      %2147 = dma.done [#allocation6], 128
    $region41: #{tpu_custom_call.1} parent=1 // pred_fallthru
      _
    %2148 = vsyncpa [#allocation6], 1

</llo_original>
